<compile_context>
chip_gen: v7x
topology: tpu7x:2x2x1
jax: 0.10.0
libtpu: 0.0.40
codegen_flags: <defaults>
</compile_context>

<pallas_src>
import functools

import jax
import jax.numpy as jnp
import numpy as np
from jax.experimental import pallas as pl
from jax.experimental.pallas import tpu as pltpu

EPS = 1e-12      # matches nn.LayerNorm(..., eps=1e-12) in the PyTorch module
HEADW = 128      # lane-dense width of the packed head output (cols 0/1/2 used)

# Row layout of the packed per-width parameter vectors.
_VEC_H = ("b1", "g1", "be1", "bf1", "gf1", "bef1",
          "bf2", "gf2", "bef2", "ba1", "ga1", "bea1")          # width H
_VEC_HH = ("bo1", "go1", "beo1", "ba2", "ga2", "bea2")          # width H//2


def _round_up(x, m):
    return (x + m - 1) // m * m


def _ln(x, g, b):
    """PyTorch-style LayerNorm (biased variance), one-pass E[x^2]-mu^2 form so
    the two lane reductions can issue concurrently."""
    mu = jnp.mean(x, axis=-1, keepdims=True)
    ms = jnp.mean(x * x, axis=-1, keepdims=True)
    var = jnp.maximum(ms - mu * mu, 0.0)
    return (x - mu) * jax.lax.rsqrt(var + EPS) * g + b


def _bdot(x, w):
    """bf16 x bf16 -> f32 MXU matmul (f32 accumulation)."""
    return jnp.dot(x.astype(jnp.bfloat16), w.astype(jnp.bfloat16),
                   preferred_element_type=jnp.float32)


def inference_head_kernel(
    sup_ref, fg_ref,
    w1_ref, wf1a_ref, wf1b_ref, wf2_ref,
    wao_ref, wa2_ref, w3a_ref, w3b_ref,
    vh_ref, vhh_ref, bh_ref,
    out_ref,
    *, hidden_size,
):
    vh = vh_ref[...]      # (12, H)    f32 biases / LN params (width H)
    vhh = vhh_ref[...]    # (6, H//2)  f32 biases / LN params (width H//2)

    def rH(i):            # (1, H) row of the packed width-H vectors
        return vh[i:i + 1, :]

    def rHh(i):           # (1, H//2) row of the packed width-H//2 vectors
        return vhh[i:i + 1, :]

    # Activations arrive in f32; cast to bf16 on the VPU (free under MXU).
    sup = sup_ref[...].astype(jnp.bfloat16)   # (tm, D)
    fg = fg_ref[...].astype(jnp.bfloat16)     # (tm, H)

    # feature_extract: Linear -> ReLU -> LayerNorm (Dropout = identity)
    h = jnp.maximum(_bdot(sup, w1_ref[...]) + rH(0), 0.0)
    out1 = _ln(h, rH(1), rH(2))

    # fuse_block[0:4]: concat(out1, fg) @ Wf1 implemented as a split matmul
    # (Wf1 = [Wf1a; Wf1b]) to avoid a lane-dim concatenate.
    h = _bdot(out1, wf1a_ref[...]) + _bdot(fg, wf1b_ref[...]) + rH(3)
    h = _ln(jnp.maximum(h, 0.0), rH(4), rH(5))
    # fuse_block[4:8]
    h = jnp.maximum(_bdot(h, wf2_ref[...]) + rH(6), 0.0)
    fused = _ln(h, rH(7), rH(8))

    # wa1 and wo1 both consume `fused`: fused into one (H, H + H//2) matmul.
    ao = _bdot(fused, wao_ref[...])           # (tm, H + H//2)

    # att_output_layer (two hidden layers)
    a = jnp.maximum(ao[:, :hidden_size] + rH(9), 0.0)
    a = _ln(a, rH(10), rH(11))
    a = jnp.maximum(_bdot(a, wa2_ref[...]) + rHh(3), 0.0)
    a = _ln(a, rHh(4), rHh(5))

    # output_layer hidden layer
    o = jnp.maximum(ao[:, hidden_size:] + rHh(0), 0.0)
    o = _ln(o, rHh(1), rHh(2))

    # Width-1 heads fused into one lane-dense 128-wide matmul:
    #   column 0 = a @ Wa3 + ba3   (att)
    #   column 1 = o @ Wo2 + bo2   (logit)
    #   column 2 = o @ Wo2 + bo2   -> sigmoid applied below (infer_mask)
    heads = _bdot(a, w3a_ref[...]) + _bdot(o, w3b_ref[...]) + bh_ref[...]
    lane = jax.lax.broadcasted_iota(jnp.int32, heads.shape, 1)
    heads = jnp.where(lane == 2, jax.nn.sigmoid(heads), heads)   # EUP slot
    out_ref[...] = heads.astype(out_ref.dtype)                   # bf16 writeback


def init_params(key, input_size, hidden_size):
    """Deterministic synthetic parameters. Linear weights are stored as
    (in_features, out_features); biases/LN params as (1, features)."""
    ks = iter(jax.random.split(key, 32))

    def lin(d_in, d_out):
        w = jax.random.normal(next(ks), (d_in, d_out), jnp.float32) * 0.05
        b = jax.random.normal(next(ks), (1, d_out), jnp.float32) * 0.05
        return w, b

    def ln(d):
        g = 1.0 + jax.random.normal(next(ks), (1, d), jnp.float32) * 0.05
        b = jax.random.normal(next(ks), (1, d), jnp.float32) * 0.05
        return g, b

    half = hidden_size // 2
    p = {}
    p["w1"], p["b1"] = lin(input_size, hidden_size)
    p["g1"], p["be1"] = ln(hidden_size)
    wf1, p["bf1"] = lin(2 * hidden_size, hidden_size)
    p["wf1a"], p["wf1b"] = wf1[:hidden_size], wf1[hidden_size:]
    p["gf1"], p["bef1"] = ln(hidden_size)
    p["wf2"], p["bf2"] = lin(hidden_size, hidden_size)
    p["gf2"], p["bef2"] = ln(hidden_size)
    p["wo1"], p["bo1"] = lin(hidden_size, half)
    p["go1"], p["beo1"] = ln(half)
    p["wo2"], p["bo2"] = lin(half, 1)
    p["wa1"], p["ba1"] = lin(hidden_size, hidden_size)
    p["ga1"], p["bea1"] = ln(hidden_size)
    p["wa2"], p["ba2"] = lin(hidden_size, half)
    p["ga2"], p["bea2"] = ln(half)
    p["wa3"], p["ba3"] = lin(half, 1)
    return p


def pack_params(params):
    """One-time parameter packing (outside the per-call jit):
    bf16 weight casts, wa1|wo1 fusion, head-column embedding, vector packing."""
    bf16 = jnp.bfloat16
    Hh = params["wo1"].shape[1]

    packed = {
        "w1": params["w1"].astype(bf16),
        "wf1a": params["wf1a"].astype(bf16),
        "wf1b": params["wf1b"].astype(bf16),
        "wf2": params["wf2"].astype(bf16),
        "wao": jnp.concatenate([params["wa1"], params["wo1"]], axis=1).astype(bf16),
        "wa2": params["wa2"].astype(bf16),
    }
    # Width-1 heads embedded into zero-padded 128-wide weights + bias.
    w3a = jnp.zeros((Hh, HEADW), jnp.float32).at[:, 0].set(params["wa3"][:, 0])
    w3b = (jnp.zeros((Hh, HEADW), jnp.float32)
           .at[:, 1].set(params["wo2"][:, 0])
           .at[:, 2].set(params["wo2"][:, 0]))
    bh = (jnp.zeros((1, HEADW), jnp.float32)
          .at[0, 0].set(params["ba3"][0, 0])
          .at[0, 1].set(params["bo2"][0, 0])
          .at[0, 2].set(params["bo2"][0, 0]))
    packed["w3a"] = w3a.astype(bf16)
    packed["w3b"] = w3b.astype(bf16)
    packed["bh"] = bh
    packed["vh"] = jnp.concatenate([params[k] for k in _VEC_H], axis=0).astype(jnp.float32)
    packed["vhh"] = jnp.concatenate([params[k] for k in _VEC_HH], axis=0).astype(jnp.float32)
    return packed


def _vmem_and_tile(tm):
    """Per-generation VMEM limit / row-tile selection (trace-time, static)."""
    try:
        cap = int(pltpu.get_tpu_info().vmem_capacity_bytes)
    except Exception:
        cap = 64 * 1024 * 1024
    vmem_limit = min(int(cap * 0.75), 110 * 1024 * 1024)   # 48 MiB on v7x, 96 MiB on v5e/v6e
    if tm is None:
        tm = 512 if cap <= 64 * 1024 * 1024 else 1024
    return vmem_limit, int(tm)


@functools.partial(jax.jit, static_argnames=("tm",))
def inference_head_v4(packed, sup_embeds, cg_res, fg_res, *, tm=None):
    del cg_res  # unused by the reference forward
    B, S, D = sup_embeds.shape
    H = fg_res.shape[-1]
    Hh = packed["wa2"].shape[1]
    N = B * S

    vmem_limit, tm_req = _vmem_and_tile(tm)

    # Effective tile: multiple of 8, <= requested tile, and capped so the grid
    # has >= 2 tiles whenever possible (keeps both v7x TensorCores busy).
    n8 = _round_up(N, 8)
    tm_cap = max(8, _round_up(pl.cdiv(n8, 2), 8))
    tm_eff = min(_round_up(tm_req, 8), tm_cap)
    n_tiles = pl.cdiv(n8, tm_eff)
    n_pad = n_tiles * tm_eff

    # Activations stay f32; pad only if the final tile is ragged.
    sup2 = sup_embeds.reshape(N, D)
    fg2 = fg_res.reshape(N, H)
    if n_pad != N:
        sup2 = jnp.pad(sup2, ((0, n_pad - N), (0, 0)))
        fg2 = jnp.pad(fg2, ((0, n_pad - N), (0, 0)))

    pops = [packed[k] for k in ("w1", "wf1a", "wf1b", "wf2", "wao", "wa2",
                                "w3a", "w3b", "vh", "vhh", "bh")]

    def wspec(a):
        # Grid-invariant operand: single-buffered (index map never changes).
        return pl.BlockSpec(a.shape, lambda i: (0, 0),
                            pipeline_mode=pl.Buffered(1))

    flops = 2 * n_pad * (D * H + 3 * H * H + H * (H + Hh) + H * Hh + 2 * Hh * HEADW)
    transcendentals = n_pad * (6 + HEADW)        # 6 rsqrt/row + sigmoid block
    bytes_accessed = (int(sup2.size) * 4 + int(fg2.size) * 4
                      + sum(int(a.size) * a.dtype.itemsize for a in pops)
                      + n_pad * HEADW * 2)

    packed_out = pl.pallas_call(
        functools.partial(inference_head_kernel, hidden_size=H),
        out_shape=jax.ShapeDtypeStruct((n_pad, HEADW), jnp.bfloat16),
        grid_spec=pltpu.PrefetchScalarGridSpec(
            num_scalar_prefetch=0,
            grid=(n_tiles,),
            in_specs=[pl.BlockSpec((tm_eff, D), lambda i: (i, 0)),
                      pl.BlockSpec((tm_eff, H), lambda i: (i, 0))]
                     + [wspec(a) for a in pops],
            out_specs=pl.BlockSpec((tm_eff, HEADW), lambda i: (i, 0)),
        ),
        compiler_params=pltpu.CompilerParams(
            dimension_semantics=("parallel",),
            vmem_limit_bytes=vmem_limit,
        ),
        cost_estimate=pl.CostEstimate(flops=flops,
                                      transcendentals=transcendentals,
                                      bytes_accessed=bytes_accessed),
    )(sup2, fg2, *pops)

    att_out = packed_out[:N, 0].astype(jnp.float32).reshape(B, S, 1)
    infer_logits = packed_out[:N, 1].astype(jnp.float32).reshape(B, S)
    infer_mask = packed_out[:N, 2].astype(jnp.float32).reshape(B, S)
    return att_out, infer_logits, infer_mask


def reference_forward(params, sup_embeds, cg_res, fg_res):
    """Pure-JAX reference mirroring the kernel's bf16-matmul / f32-LN / bf16-out
    recipe (used only for the correctness assert)."""
    del cg_res
    p = params
    bf16 = jnp.bfloat16

    def bdot(x, w):
        return jnp.dot(x.astype(bf16), w.astype(bf16),
                       preferred_element_type=jnp.float32)

    def ln(x, g, b):
        mu = jnp.mean(x, axis=-1, keepdims=True)
        ms = jnp.mean(x * x, axis=-1, keepdims=True)
        var = jnp.maximum(ms - mu * mu, 0.0)
        return (x - mu) * jax.lax.rsqrt(var + EPS) * g + b

    out1 = ln(jnp.maximum(bdot(sup_embeds, p["w1"]) + p["b1"], 0.0),
              p["g1"], p["be1"])
    h = bdot(out1, p["wf1a"]) + bdot(fg_res, p["wf1b"]) + p["bf1"]
    h = ln(jnp.maximum(h, 0.0), p["gf1"], p["bef1"])
    fused = ln(jnp.maximum(bdot(h, p["wf2"]) + p["bf2"], 0.0),
               p["gf2"], p["bef2"])
    a = ln(jnp.maximum(bdot(fused, p["wa1"]) + p["ba1"], 0.0), p["ga1"], p["bea1"])
    a = ln(jnp.maximum(bdot(a, p["wa2"]) + p["ba2"], 0.0), p["ga2"], p["bea2"])
    att = bdot(a, p["wa3"]) + p["ba3"]
    o = ln(jnp.maximum(bdot(fused, p["wo1"]) + p["bo1"], 0.0), p["go1"], p["beo1"])
    logits = (bdot(o, p["wo2"]) + p["bo2"])[..., 0]
    mask = jax.nn.sigmoid(logits)

    def out_round(x):   # mirror the kernel's bf16 writeback
        return x.astype(bf16).astype(jnp.float32)

    return out_round(att), out_round(logits), out_round(mask)


if __name__ == "__main__":
    B, S = 2, 8
    input_size, hidden_size = 32, 32

    key = jax.random.PRNGKey(0)
    k_params, k_sup, k_cg, k_fg = jax.random.split(key, 4)
    params = init_params(k_params, input_size, hidden_size)
    packed = jax.block_until_ready(pack_params(params))   # one-time packing

    sup_embeds = jax.random.normal(k_sup, (B, S, input_size), jnp.float32)
    cg_res = jax.random.normal(k_cg, (B, S, hidden_size), jnp.float32)  # unused
    fg_res = jax.random.normal(k_fg, (B, S, hidden_size), jnp.float32)

    att_out, infer_logits, infer_mask = jax.block_until_ready(
        inference_head_v4(packed, sup_embeds, cg_res, fg_res))

    # Sanity vs pure-JAX reference (same bf16-matmul / f32-LN / bf16-out recipe).
    # Tolerance accounts for the bf16 output writeback (~one bf16 ulp).
    r_att, r_logits, r_mask = reference_forward(params, sup_embeds, cg_res, fg_res)
    assert att_out.shape == (B, S, 1)
    assert infer_logits.shape == (B, S)
    assert infer_mask.shape == (B, S)
    np.testing.assert_allclose(np.asarray(att_out), np.asarray(r_att),
                               atol=1e-2, rtol=1e-2)
    np.testing.assert_allclose(np.asarray(infer_logits), np.asarray(r_logits),
                               atol=1e-2, rtol=1e-2)
    np.testing.assert_allclose(np.asarray(infer_mask), np.asarray(r_mask),
                               atol=1e-2, rtol=1e-2)

    print("KERNEL_OK")
</pallas_src>

<mosaic_0001>
module attributes {stable_mosaic.version = 11 : i64} {
  func.func @inference_head_kernel(%arg0: i32, %arg1: memref<8x32xf32, #tpu.memory_space<vmem>>, %arg2: memref<8x32xf32, #tpu.memory_space<vmem>>, %arg3: memref<32x32xbf16, #tpu.memory_space<vmem>>, %arg4: memref<32x32xbf16, #tpu.memory_space<vmem>>, %arg5: memref<32x32xbf16, #tpu.memory_space<vmem>>, %arg6: memref<32x32xbf16, #tpu.memory_space<vmem>>, %arg7: memref<32x48xbf16, #tpu.memory_space<vmem>>, %arg8: memref<32x16xbf16, #tpu.memory_space<vmem>>, %arg9: memref<16x128xbf16, #tpu.memory_space<vmem>>, %arg10: memref<16x128xbf16, #tpu.memory_space<vmem>>, %arg11: memref<12x32xf32, #tpu.memory_space<vmem>>, %arg12: memref<6x16xf32, #tpu.memory_space<vmem>>, %arg13: memref<1x128xf32, #tpu.memory_space<vmem>>, %arg14: memref<8x128xbf16, #tpu.memory_space<vmem>>) attributes {dimension_semantics = [#tpu.dimension_semantics<parallel>], iteration_bounds = array<i64: 2>, scalar_prefetch = 0 : i64, scratch_operands = 0 : i64, tpu.core_type = #tpu.core_type<tc>, window_params = [{transform_indices = @transform_0, window_bounds = array<i64: 8, 32>}, {transform_indices = @transform_1, window_bounds = array<i64: 8, 32>}, {pipeline_mode = #tpu.pipeline_mode<synchronous>, transform_indices = @transform_2, window_bounds = array<i64: 32, 32>}, {pipeline_mode = #tpu.pipeline_mode<synchronous>, transform_indices = @transform_3, window_bounds = array<i64: 32, 32>}, {pipeline_mode = #tpu.pipeline_mode<synchronous>, transform_indices = @transform_4, window_bounds = array<i64: 32, 32>}, {pipeline_mode = #tpu.pipeline_mode<synchronous>, transform_indices = @transform_5, window_bounds = array<i64: 32, 32>}, {pipeline_mode = #tpu.pipeline_mode<synchronous>, transform_indices = @transform_6, window_bounds = array<i64: 32, 48>}, {pipeline_mode = #tpu.pipeline_mode<synchronous>, transform_indices = @transform_7, window_bounds = array<i64: 32, 16>}, {pipeline_mode = #tpu.pipeline_mode<synchronous>, transform_indices = @transform_8, window_bounds = array<i64: 16, 128>}, {pipeline_mode = #tpu.pipeline_mode<synchronous>, transform_indices = @transform_9, window_bounds = array<i64: 16, 128>}, {pipeline_mode = #tpu.pipeline_mode<synchronous>, transform_indices = @transform_10, window_bounds = array<i64: 12, 32>}, {pipeline_mode = #tpu.pipeline_mode<synchronous>, transform_indices = @transform_11, window_bounds = array<i64: 6, 16>}, {pipeline_mode = #tpu.pipeline_mode<synchronous>, transform_indices = @transform_12, window_bounds = array<i64: 1, 128>}, {transform_indices = @transform_13, window_bounds = array<i64: 8, 128>}]} {
    %c0 = arith.constant 0 : index
    %c0_0 = arith.constant 0 : index
    %0 = vector.load %arg11[%c0, %c0_0] : memref<12x32xf32, #tpu.memory_space<vmem>>, vector<12x32xf32>
    %c0_1 = arith.constant 0 : index
    %c0_2 = arith.constant 0 : index
    %1 = vector.load %arg12[%c0_1, %c0_2] : memref<6x16xf32, #tpu.memory_space<vmem>>, vector<6x16xf32>
    %c0_3 = arith.constant 0 : index
    %c0_4 = arith.constant 0 : index
    %2 = vector.load %arg1[%c0_3, %c0_4] : memref<8x32xf32, #tpu.memory_space<vmem>>, vector<8x32xf32>
    %3 = arith.truncf %2 : vector<8x32xf32> to vector<8x32xbf16>
    %c0_5 = arith.constant 0 : index
    %c0_6 = arith.constant 0 : index
    %4 = vector.load %arg2[%c0_5, %c0_6] : memref<8x32xf32, #tpu.memory_space<vmem>>, vector<8x32xf32>
    %5 = arith.truncf %4 : vector<8x32xf32> to vector<8x32xbf16>
    %c0_7 = arith.constant 0 : index
    %c0_8 = arith.constant 0 : index
    %6 = vector.load %arg3[%c0_7, %c0_8] : memref<32x32xbf16, #tpu.memory_space<vmem>>, vector<32x32xbf16>
    %cst = arith.constant dense<0.000000e+00> : vector<8x32xf32>
    %7 = tpu.matmul %3, %6, %cst {dimension_numbers = #tpu.dot_dimension_numbers<[1], [0], [0], [1], [0, 0, 1, 1], [], []>} : vector<8x32xbf16>, vector<32x32xbf16>, vector<8x32xf32> -> vector<8x32xf32>
    %8 = vector.extract_strided_slice %0 {offsets = [0, 0], sizes = [1, 32], strides = [1, 1]} : vector<12x32xf32> to vector<1x32xf32>
    %9 = vector.broadcast %8 : vector<1x32xf32> to vector<8x32xf32>
    %10 = arith.addf %7, %9 : vector<8x32xf32>
    %cst_9 = arith.constant 0.000000e+00 : f32
    %11 = vector.broadcast %cst_9 : f32 to vector<8x32xf32>
    %12 = arith.maximumf %10, %11 : vector<8x32xf32>
    %13 = vector.extract_strided_slice %0 {offsets = [1, 0], sizes = [1, 32], strides = [1, 1]} : vector<12x32xf32> to vector<1x32xf32>
    %14 = vector.extract_strided_slice %0 {offsets = [2, 0], sizes = [1, 32], strides = [1, 1]} : vector<12x32xf32> to vector<1x32xf32>
    %cst_10 = arith.constant dense<0.000000e+00> : vector<8xf32>
    %15 = vector.multi_reduction <add>, %12, %cst_10 [1] : vector<8x32xf32> to vector<8xf32>
    %16 = vector.shape_cast %15 : vector<8xf32> to vector<8x1xf32>
    %cst_11 = arith.constant 3.200000e+01 : f32
    %17 = vector.broadcast %cst_11 : f32 to vector<8x1xf32>
    %18 = arith.divf %16, %17 : vector<8x1xf32>
    %19 = arith.mulf %12, %12 : vector<8x32xf32>
    %cst_12 = arith.constant dense<0.000000e+00> : vector<8xf32>
    %20 = vector.multi_reduction <add>, %19, %cst_12 [1] : vector<8x32xf32> to vector<8xf32>
    %21 = vector.shape_cast %20 : vector<8xf32> to vector<8x1xf32>
    %cst_13 = arith.constant 3.200000e+01 : f32
    %22 = vector.broadcast %cst_13 : f32 to vector<8x1xf32>
    %23 = arith.divf %21, %22 : vector<8x1xf32>
    %24 = arith.mulf %18, %18 : vector<8x1xf32>
    %25 = arith.subf %23, %24 : vector<8x1xf32>
    %cst_14 = arith.constant 0.000000e+00 : f32
    %26 = vector.broadcast %cst_14 : f32 to vector<8x1xf32>
    %27 = arith.maximumf %25, %26 : vector<8x1xf32>
    %28 = vector.broadcast %18 : vector<8x1xf32> to vector<8x32xf32>
    %29 = arith.subf %12, %28 : vector<8x32xf32>
    %cst_15 = arith.constant 9.99999996E-13 : f32
    %30 = vector.broadcast %cst_15 : f32 to vector<8x1xf32>
    %31 = arith.addf %27, %30 : vector<8x1xf32>
    %32 = math.rsqrt %31 : vector<8x1xf32>
    %33 = vector.broadcast %32 : vector<8x1xf32> to vector<8x32xf32>
    %34 = arith.mulf %29, %33 : vector<8x32xf32>
    %35 = vector.broadcast %13 : vector<1x32xf32> to vector<8x32xf32>
    %36 = arith.mulf %34, %35 : vector<8x32xf32>
    %37 = vector.broadcast %14 : vector<1x32xf32> to vector<8x32xf32>
    %38 = arith.addf %36, %37 : vector<8x32xf32>
    %c0_16 = arith.constant 0 : index
    %c0_17 = arith.constant 0 : index
    %39 = vector.load %arg4[%c0_16, %c0_17] : memref<32x32xbf16, #tpu.memory_space<vmem>>, vector<32x32xbf16>
    %40 = arith.truncf %38 : vector<8x32xf32> to vector<8x32xbf16>
    %cst_18 = arith.constant dense<0.000000e+00> : vector<8x32xf32>
    %41 = tpu.matmul %40, %39, %cst_18 {dimension_numbers = #tpu.dot_dimension_numbers<[1], [0], [0], [1], [0, 0, 1, 1], [], []>} : vector<8x32xbf16>, vector<32x32xbf16>, vector<8x32xf32> -> vector<8x32xf32>
    %c0_19 = arith.constant 0 : index
    %c0_20 = arith.constant 0 : index
    %42 = vector.load %arg5[%c0_19, %c0_20] : memref<32x32xbf16, #tpu.memory_space<vmem>>, vector<32x32xbf16>
    %cst_21 = arith.constant dense<0.000000e+00> : vector<8x32xf32>
    %43 = tpu.matmul %5, %42, %cst_21 {dimension_numbers = #tpu.dot_dimension_numbers<[1], [0], [0], [1], [0, 0, 1, 1], [], []>} : vector<8x32xbf16>, vector<32x32xbf16>, vector<8x32xf32> -> vector<8x32xf32>
    %44 = arith.addf %41, %43 : vector<8x32xf32>
    %45 = vector.extract_strided_slice %0 {offsets = [3, 0], sizes = [1, 32], strides = [1, 1]} : vector<12x32xf32> to vector<1x32xf32>
    %46 = vector.broadcast %45 : vector<1x32xf32> to vector<8x32xf32>
    %47 = arith.addf %44, %46 : vector<8x32xf32>
    %cst_22 = arith.constant 0.000000e+00 : f32
    %48 = vector.broadcast %cst_22 : f32 to vector<8x32xf32>
    %49 = arith.maximumf %47, %48 : vector<8x32xf32>
    %50 = vector.extract_strided_slice %0 {offsets = [4, 0], sizes = [1, 32], strides = [1, 1]} : vector<12x32xf32> to vector<1x32xf32>
    %51 = vector.extract_strided_slice %0 {offsets = [5, 0], sizes = [1, 32], strides = [1, 1]} : vector<12x32xf32> to vector<1x32xf32>
    %cst_23 = arith.constant dense<0.000000e+00> : vector<8xf32>
    %52 = vector.multi_reduction <add>, %49, %cst_23 [1] : vector<8x32xf32> to vector<8xf32>
    %53 = vector.shape_cast %52 : vector<8xf32> to vector<8x1xf32>
    %cst_24 = arith.constant 3.200000e+01 : f32
    %54 = vector.broadcast %cst_24 : f32 to vector<8x1xf32>
    %55 = arith.divf %53, %54 : vector<8x1xf32>
    %56 = arith.mulf %49, %49 : vector<8x32xf32>
    %cst_25 = arith.constant dense<0.000000e+00> : vector<8xf32>
    %57 = vector.multi_reduction <add>, %56, %cst_25 [1] : vector<8x32xf32> to vector<8xf32>
    %58 = vector.shape_cast %57 : vector<8xf32> to vector<8x1xf32>
    %cst_26 = arith.constant 3.200000e+01 : f32
    %59 = vector.broadcast %cst_26 : f32 to vector<8x1xf32>
    %60 = arith.divf %58, %59 : vector<8x1xf32>
    %61 = arith.mulf %55, %55 : vector<8x1xf32>
    %62 = arith.subf %60, %61 : vector<8x1xf32>
    %cst_27 = arith.constant 0.000000e+00 : f32
    %63 = vector.broadcast %cst_27 : f32 to vector<8x1xf32>
    %64 = arith.maximumf %62, %63 : vector<8x1xf32>
    %65 = vector.broadcast %55 : vector<8x1xf32> to vector<8x32xf32>
    %66 = arith.subf %49, %65 : vector<8x32xf32>
    %cst_28 = arith.constant 9.99999996E-13 : f32
    %67 = vector.broadcast %cst_28 : f32 to vector<8x1xf32>
    %68 = arith.addf %64, %67 : vector<8x1xf32>
    %69 = math.rsqrt %68 : vector<8x1xf32>
    %70 = vector.broadcast %69 : vector<8x1xf32> to vector<8x32xf32>
    %71 = arith.mulf %66, %70 : vector<8x32xf32>
    %72 = vector.broadcast %50 : vector<1x32xf32> to vector<8x32xf32>
    %73 = arith.mulf %71, %72 : vector<8x32xf32>
    %74 = vector.broadcast %51 : vector<1x32xf32> to vector<8x32xf32>
    %75 = arith.addf %73, %74 : vector<8x32xf32>
    %c0_29 = arith.constant 0 : index
    %c0_30 = arith.constant 0 : index
    %76 = vector.load %arg6[%c0_29, %c0_30] : memref<32x32xbf16, #tpu.memory_space<vmem>>, vector<32x32xbf16>
    %77 = arith.truncf %75 : vector<8x32xf32> to vector<8x32xbf16>
    %cst_31 = arith.constant dense<0.000000e+00> : vector<8x32xf32>
    %78 = tpu.matmul %77, %76, %cst_31 {dimension_numbers = #tpu.dot_dimension_numbers<[1], [0], [0], [1], [0, 0, 1, 1], [], []>} : vector<8x32xbf16>, vector<32x32xbf16>, vector<8x32xf32> -> vector<8x32xf32>
    %79 = vector.extract_strided_slice %0 {offsets = [6, 0], sizes = [1, 32], strides = [1, 1]} : vector<12x32xf32> to vector<1x32xf32>
    %80 = vector.broadcast %79 : vector<1x32xf32> to vector<8x32xf32>
    %81 = arith.addf %78, %80 : vector<8x32xf32>
    %cst_32 = arith.constant 0.000000e+00 : f32
    %82 = vector.broadcast %cst_32 : f32 to vector<8x32xf32>
    %83 = arith.maximumf %81, %82 : vector<8x32xf32>
    %84 = vector.extract_strided_slice %0 {offsets = [7, 0], sizes = [1, 32], strides = [1, 1]} : vector<12x32xf32> to vector<1x32xf32>
    %85 = vector.extract_strided_slice %0 {offsets = [8, 0], sizes = [1, 32], strides = [1, 1]} : vector<12x32xf32> to vector<1x32xf32>
    %cst_33 = arith.constant dense<0.000000e+00> : vector<8xf32>
    %86 = vector.multi_reduction <add>, %83, %cst_33 [1] : vector<8x32xf32> to vector<8xf32>
    %87 = vector.shape_cast %86 : vector<8xf32> to vector<8x1xf32>
    %cst_34 = arith.constant 3.200000e+01 : f32
    %88 = vector.broadcast %cst_34 : f32 to vector<8x1xf32>
    %89 = arith.divf %87, %88 : vector<8x1xf32>
    %90 = arith.mulf %83, %83 : vector<8x32xf32>
    %cst_35 = arith.constant dense<0.000000e+00> : vector<8xf32>
    %91 = vector.multi_reduction <add>, %90, %cst_35 [1] : vector<8x32xf32> to vector<8xf32>
    %92 = vector.shape_cast %91 : vector<8xf32> to vector<8x1xf32>
    %cst_36 = arith.constant 3.200000e+01 : f32
    %93 = vector.broadcast %cst_36 : f32 to vector<8x1xf32>
    %94 = arith.divf %92, %93 : vector<8x1xf32>
    %95 = arith.mulf %89, %89 : vector<8x1xf32>
    %96 = arith.subf %94, %95 : vector<8x1xf32>
    %cst_37 = arith.constant 0.000000e+00 : f32
    %97 = vector.broadcast %cst_37 : f32 to vector<8x1xf32>
    %98 = arith.maximumf %96, %97 : vector<8x1xf32>
    %99 = vector.broadcast %89 : vector<8x1xf32> to vector<8x32xf32>
    %100 = arith.subf %83, %99 : vector<8x32xf32>
    %cst_38 = arith.constant 9.99999996E-13 : f32
    %101 = vector.broadcast %cst_38 : f32 to vector<8x1xf32>
    %102 = arith.addf %98, %101 : vector<8x1xf32>
    %103 = math.rsqrt %102 : vector<8x1xf32>
    %104 = vector.broadcast %103 : vector<8x1xf32> to vector<8x32xf32>
    %105 = arith.mulf %100, %104 : vector<8x32xf32>
    %106 = vector.broadcast %84 : vector<1x32xf32> to vector<8x32xf32>
    %107 = arith.mulf %105, %106 : vector<8x32xf32>
    %108 = vector.broadcast %85 : vector<1x32xf32> to vector<8x32xf32>
    %109 = arith.addf %107, %108 : vector<8x32xf32>
    %c0_39 = arith.constant 0 : index
    %c0_40 = arith.constant 0 : index
    %110 = vector.load %arg7[%c0_39, %c0_40] : memref<32x48xbf16, #tpu.memory_space<vmem>>, vector<32x48xbf16>
    %111 = arith.truncf %109 : vector<8x32xf32> to vector<8x32xbf16>
    %cst_41 = arith.constant dense<0.000000e+00> : vector<8x48xf32>
    %112 = tpu.matmul %111, %110, %cst_41 {dimension_numbers = #tpu.dot_dimension_numbers<[1], [0], [0], [1], [0, 0, 1, 1], [], []>} : vector<8x32xbf16>, vector<32x48xbf16>, vector<8x48xf32> -> vector<8x48xf32>
    %113 = vector.extract_strided_slice %112 {offsets = [0, 0], sizes = [8, 32], strides = [1, 1]} : vector<8x48xf32> to vector<8x32xf32>
    %114 = vector.extract_strided_slice %0 {offsets = [9, 0], sizes = [1, 32], strides = [1, 1]} : vector<12x32xf32> to vector<1x32xf32>
    %115 = vector.broadcast %114 : vector<1x32xf32> to vector<8x32xf32>
    %116 = arith.addf %113, %115 : vector<8x32xf32>
    %cst_42 = arith.constant 0.000000e+00 : f32
    %117 = vector.broadcast %cst_42 : f32 to vector<8x32xf32>
    %118 = arith.maximumf %116, %117 : vector<8x32xf32>
    %119 = vector.extract_strided_slice %0 {offsets = [10, 0], sizes = [1, 32], strides = [1, 1]} : vector<12x32xf32> to vector<1x32xf32>
    %120 = vector.extract_strided_slice %0 {offsets = [11, 0], sizes = [1, 32], strides = [1, 1]} : vector<12x32xf32> to vector<1x32xf32>
    %cst_43 = arith.constant dense<0.000000e+00> : vector<8xf32>
    %121 = vector.multi_reduction <add>, %118, %cst_43 [1] : vector<8x32xf32> to vector<8xf32>
    %122 = vector.shape_cast %121 : vector<8xf32> to vector<8x1xf32>
    %cst_44 = arith.constant 3.200000e+01 : f32
    %123 = vector.broadcast %cst_44 : f32 to vector<8x1xf32>
    %124 = arith.divf %122, %123 : vector<8x1xf32>
    %125 = arith.mulf %118, %118 : vector<8x32xf32>
    %cst_45 = arith.constant dense<0.000000e+00> : vector<8xf32>
    %126 = vector.multi_reduction <add>, %125, %cst_45 [1] : vector<8x32xf32> to vector<8xf32>
    %127 = vector.shape_cast %126 : vector<8xf32> to vector<8x1xf32>
    %cst_46 = arith.constant 3.200000e+01 : f32
    %128 = vector.broadcast %cst_46 : f32 to vector<8x1xf32>
    %129 = arith.divf %127, %128 : vector<8x1xf32>
    %130 = arith.mulf %124, %124 : vector<8x1xf32>
    %131 = arith.subf %129, %130 : vector<8x1xf32>
    %cst_47 = arith.constant 0.000000e+00 : f32
    %132 = vector.broadcast %cst_47 : f32 to vector<8x1xf32>
    %133 = arith.maximumf %131, %132 : vector<8x1xf32>
    %134 = vector.broadcast %124 : vector<8x1xf32> to vector<8x32xf32>
    %135 = arith.subf %118, %134 : vector<8x32xf32>
    %cst_48 = arith.constant 9.99999996E-13 : f32
    %136 = vector.broadcast %cst_48 : f32 to vector<8x1xf32>
    %137 = arith.addf %133, %136 : vector<8x1xf32>
    %138 = math.rsqrt %137 : vector<8x1xf32>
    %139 = vector.broadcast %138 : vector<8x1xf32> to vector<8x32xf32>
    %140 = arith.mulf %135, %139 : vector<8x32xf32>
    %141 = vector.broadcast %119 : vector<1x32xf32> to vector<8x32xf32>
    %142 = arith.mulf %140, %141 : vector<8x32xf32>
    %143 = vector.broadcast %120 : vector<1x32xf32> to vector<8x32xf32>
    %144 = arith.addf %142, %143 : vector<8x32xf32>
    %c0_49 = arith.constant 0 : index
    %c0_50 = arith.constant 0 : index
    %145 = vector.load %arg8[%c0_49, %c0_50] : memref<32x16xbf16, #tpu.memory_space<vmem>>, vector<32x16xbf16>
    %146 = arith.truncf %144 : vector<8x32xf32> to vector<8x32xbf16>
    %cst_51 = arith.constant dense<0.000000e+00> : vector<8x16xf32>
    %147 = tpu.matmul %146, %145, %cst_51 {dimension_numbers = #tpu.dot_dimension_numbers<[1], [0], [0], [1], [0, 0, 1, 1], [], []>} : vector<8x32xbf16>, vector<32x16xbf16>, vector<8x16xf32> -> vector<8x16xf32>
    %148 = vector.extract_strided_slice %1 {offsets = [3, 0], sizes = [1, 16], strides = [1, 1]} : vector<6x16xf32> to vector<1x16xf32>
    %149 = vector.broadcast %148 : vector<1x16xf32> to vector<8x16xf32>
    %150 = arith.addf %147, %149 : vector<8x16xf32>
    %cst_52 = arith.constant 0.000000e+00 : f32
    %151 = vector.broadcast %cst_52 : f32 to vector<8x16xf32>
    %152 = arith.maximumf %150, %151 : vector<8x16xf32>
    %153 = vector.extract_strided_slice %1 {offsets = [4, 0], sizes = [1, 16], strides = [1, 1]} : vector<6x16xf32> to vector<1x16xf32>
    %154 = vector.extract_strided_slice %1 {offsets = [5, 0], sizes = [1, 16], strides = [1, 1]} : vector<6x16xf32> to vector<1x16xf32>
    %cst_53 = arith.constant dense<0.000000e+00> : vector<8xf32>
    %155 = vector.multi_reduction <add>, %152, %cst_53 [1] : vector<8x16xf32> to vector<8xf32>
    %156 = vector.shape_cast %155 : vector<8xf32> to vector<8x1xf32>
    %cst_54 = arith.constant 1.600000e+01 : f32
    %157 = vector.broadcast %cst_54 : f32 to vector<8x1xf32>
    %158 = arith.divf %156, %157 : vector<8x1xf32>
    %159 = arith.mulf %152, %152 : vector<8x16xf32>
    %cst_55 = arith.constant dense<0.000000e+00> : vector<8xf32>
    %160 = vector.multi_reduction <add>, %159, %cst_55 [1] : vector<8x16xf32> to vector<8xf32>
    %161 = vector.shape_cast %160 : vector<8xf32> to vector<8x1xf32>
    %cst_56 = arith.constant 1.600000e+01 : f32
    %162 = vector.broadcast %cst_56 : f32 to vector<8x1xf32>
    %163 = arith.divf %161, %162 : vector<8x1xf32>
    %164 = arith.mulf %158, %158 : vector<8x1xf32>
    %165 = arith.subf %163, %164 : vector<8x1xf32>
    %cst_57 = arith.constant 0.000000e+00 : f32
    %166 = vector.broadcast %cst_57 : f32 to vector<8x1xf32>
    %167 = arith.maximumf %165, %166 : vector<8x1xf32>
    %168 = vector.broadcast %158 : vector<8x1xf32> to vector<8x16xf32>
    %169 = arith.subf %152, %168 : vector<8x16xf32>
    %cst_58 = arith.constant 9.99999996E-13 : f32
    %170 = vector.broadcast %cst_58 : f32 to vector<8x1xf32>
    %171 = arith.addf %167, %170 : vector<8x1xf32>
    %172 = math.rsqrt %171 : vector<8x1xf32>
    %173 = vector.broadcast %172 : vector<8x1xf32> to vector<8x16xf32>
    %174 = arith.mulf %169, %173 : vector<8x16xf32>
    %175 = vector.broadcast %153 : vector<1x16xf32> to vector<8x16xf32>
    %176 = arith.mulf %174, %175 : vector<8x16xf32>
    %177 = vector.broadcast %154 : vector<1x16xf32> to vector<8x16xf32>
    %178 = arith.addf %176, %177 : vector<8x16xf32>
    %179 = vector.extract_strided_slice %112 {offsets = [0, 32], sizes = [8, 16], strides = [1, 1]} : vector<8x48xf32> to vector<8x16xf32>
    %180 = vector.extract_strided_slice %1 {offsets = [0, 0], sizes = [1, 16], strides = [1, 1]} : vector<6x16xf32> to vector<1x16xf32>
    %181 = vector.broadcast %180 : vector<1x16xf32> to vector<8x16xf32>
    %182 = arith.addf %179, %181 : vector<8x16xf32>
    %cst_59 = arith.constant 0.000000e+00 : f32
    %183 = vector.broadcast %cst_59 : f32 to vector<8x16xf32>
    %184 = arith.maximumf %182, %183 : vector<8x16xf32>
    %185 = vector.extract_strided_slice %1 {offsets = [1, 0], sizes = [1, 16], strides = [1, 1]} : vector<6x16xf32> to vector<1x16xf32>
    %186 = vector.extract_strided_slice %1 {offsets = [2, 0], sizes = [1, 16], strides = [1, 1]} : vector<6x16xf32> to vector<1x16xf32>
    %cst_60 = arith.constant dense<0.000000e+00> : vector<8xf32>
    %187 = vector.multi_reduction <add>, %184, %cst_60 [1] : vector<8x16xf32> to vector<8xf32>
    %188 = vector.shape_cast %187 : vector<8xf32> to vector<8x1xf32>
    %cst_61 = arith.constant 1.600000e+01 : f32
    %189 = vector.broadcast %cst_61 : f32 to vector<8x1xf32>
    %190 = arith.divf %188, %189 : vector<8x1xf32>
    %191 = arith.mulf %184, %184 : vector<8x16xf32>
    %cst_62 = arith.constant dense<0.000000e+00> : vector<8xf32>
    %192 = vector.multi_reduction <add>, %191, %cst_62 [1] : vector<8x16xf32> to vector<8xf32>
    %193 = vector.shape_cast %192 : vector<8xf32> to vector<8x1xf32>
    %cst_63 = arith.constant 1.600000e+01 : f32
    %194 = vector.broadcast %cst_63 : f32 to vector<8x1xf32>
    %195 = arith.divf %193, %194 : vector<8x1xf32>
    %196 = arith.mulf %190, %190 : vector<8x1xf32>
    %197 = arith.subf %195, %196 : vector<8x1xf32>
    %cst_64 = arith.constant 0.000000e+00 : f32
    %198 = vector.broadcast %cst_64 : f32 to vector<8x1xf32>
    %199 = arith.maximumf %197, %198 : vector<8x1xf32>
    %200 = vector.broadcast %190 : vector<8x1xf32> to vector<8x16xf32>
    %201 = arith.subf %184, %200 : vector<8x16xf32>
    %cst_65 = arith.constant 9.99999996E-13 : f32
    %202 = vector.broadcast %cst_65 : f32 to vector<8x1xf32>
    %203 = arith.addf %199, %202 : vector<8x1xf32>
    %204 = math.rsqrt %203 : vector<8x1xf32>
    %205 = vector.broadcast %204 : vector<8x1xf32> to vector<8x16xf32>
    %206 = arith.mulf %201, %205 : vector<8x16xf32>
    %207 = vector.broadcast %185 : vector<1x16xf32> to vector<8x16xf32>
    %208 = arith.mulf %206, %207 : vector<8x16xf32>
    %209 = vector.broadcast %186 : vector<1x16xf32> to vector<8x16xf32>
    %210 = arith.addf %208, %209 : vector<8x16xf32>
    %c0_66 = arith.constant 0 : index
    %c0_67 = arith.constant 0 : index
    %211 = vector.load %arg9[%c0_66, %c0_67] : memref<16x128xbf16, #tpu.memory_space<vmem>>, vector<16x128xbf16>
    %212 = arith.truncf %178 : vector<8x16xf32> to vector<8x16xbf16>
    %cst_68 = arith.constant dense<0.000000e+00> : vector<8x128xf32>
    %213 = tpu.matmul %212, %211, %cst_68 {dimension_numbers = #tpu.dot_dimension_numbers<[1], [0], [0], [1], [0, 0, 1, 1], [], []>} : vector<8x16xbf16>, vector<16x128xbf16>, vector<8x128xf32> -> vector<8x128xf32>
    %c0_69 = arith.constant 0 : index
    %c0_70 = arith.constant 0 : index
    %214 = vector.load %arg10[%c0_69, %c0_70] : memref<16x128xbf16, #tpu.memory_space<vmem>>, vector<16x128xbf16>
    %215 = arith.truncf %210 : vector<8x16xf32> to vector<8x16xbf16>
    %cst_71 = arith.constant dense<0.000000e+00> : vector<8x128xf32>
    %216 = tpu.matmul %215, %214, %cst_71 {dimension_numbers = #tpu.dot_dimension_numbers<[1], [0], [0], [1], [0, 0, 1, 1], [], []>} : vector<8x16xbf16>, vector<16x128xbf16>, vector<8x128xf32> -> vector<8x128xf32>
    %217 = arith.addf %213, %216 : vector<8x128xf32>
    %c0_72 = arith.constant 0 : index
    %c0_73 = arith.constant 0 : index
    %218 = vector.load %arg13[%c0_72, %c0_73] : memref<1x128xf32, #tpu.memory_space<vmem>>, vector<1x128xf32>
    %219 = vector.broadcast %218 : vector<1x128xf32> to vector<8x128xf32>
    %220 = arith.addf %217, %219 : vector<8x128xf32>
    %221 = tpu.iota {dimensions = array<i32: 1>} : vector<8x128xi32>
    %c2_i32 = arith.constant 2 : i32
    %222 = vector.broadcast %c2_i32 : i32 to vector<8x128xi32>
    %223 = arith.cmpi eq, %221, %222 : vector<8x128xi32>
    %224 = arith.negf %220 : vector<8x128xf32>
    %225 = math.exp %224 : vector<8x128xf32>
    %cst_74 = arith.constant 1.000000e+00 : f32
    %226 = vector.broadcast %cst_74 : f32 to vector<8x128xf32>
    %227 = arith.addf %226, %225 : vector<8x128xf32>
    %228 = arith.divf %226, %227 : vector<8x128xf32>
    %229 = arith.select %223, %228, %220 : vector<8x128xi1>, vector<8x128xf32>
    %230 = arith.truncf %229 : vector<8x128xf32> to vector<8x128xbf16>
    %c0_75 = arith.constant 0 : index
    %c0_76 = arith.constant 0 : index
    %231 = vector.load %arg14[%c0_75, %c0_76] : memref<8x128xbf16, #tpu.memory_space<vmem>>, vector<8x128xbf16>
    tpu.vector_store %arg14[%c0_75, %c0_76], %230 {strides = array<i32>} : memref<8x128xbf16, #tpu.memory_space<vmem>>, vector<8x128xbf16>,
    return
  }
  func.func @transform_0(%arg0: i32) -> (i32, i32) {
    %c0_i32 = arith.constant 0 : i32
    %c0_i32_0 = arith.constant 0 : i32
    return %arg0, %c0_i32 : i32, i32
  }
  func.func @transform_1(%arg0: i32) -> (i32, i32) {
    %c0_i32 = arith.constant 0 : i32
    %c0_i32_0 = arith.constant 0 : i32
    return %arg0, %c0_i32 : i32, i32
  }
  func.func @transform_2(%arg0: i32) -> (i32, i32) {
    %c0_i32 = arith.constant 0 : i32
    %c0_i32_0 = arith.constant 0 : i32
    %c0_i32_1 = arith.constant 0 : i32
    return %c0_i32, %c0_i32_0 : i32, i32
  }
  func.func @transform_3(%arg0: i32) -> (i32, i32) {
    %c0_i32 = arith.constant 0 : i32
    %c0_i32_0 = arith.constant 0 : i32
    %c0_i32_1 = arith.constant 0 : i32
    return %c0_i32, %c0_i32_0 : i32, i32
  }
  func.func @transform_4(%arg0: i32) -> (i32, i32) {
    %c0_i32 = arith.constant 0 : i32
    %c0_i32_0 = arith.constant 0 : i32
    %c0_i32_1 = arith.constant 0 : i32
    return %c0_i32, %c0_i32_0 : i32, i32
  }
  func.func @transform_5(%arg0: i32) -> (i32, i32) {
    %c0_i32 = arith.constant 0 : i32
    %c0_i32_0 = arith.constant 0 : i32
    %c0_i32_1 = arith.constant 0 : i32
    return %c0_i32, %c0_i32_0 : i32, i32
  }
  func.func @transform_6(%arg0: i32) -> (i32, i32) {
    %c0_i32 = arith.constant 0 : i32
    %c0_i32_0 = arith.constant 0 : i32
    %c0_i32_1 = arith.constant 0 : i32
    return %c0_i32, %c0_i32_0 : i32, i32
  }
  func.func @transform_7(%arg0: i32) -> (i32, i32) {
    %c0_i32 = arith.constant 0 : i32
    %c0_i32_0 = arith.constant 0 : i32
    %c0_i32_1 = arith.constant 0 : i32
    return %c0_i32, %c0_i32_0 : i32, i32
  }
  func.func @transform_8(%arg0: i32) -> (i32, i32) {
    %c0_i32 = arith.constant 0 : i32
    %c0_i32_0 = arith.constant 0 : i32
    %c0_i32_1 = arith.constant 0 : i32
    return %c0_i32, %c0_i32_0 : i32, i32
  }
  func.func @transform_9(%arg0: i32) -> (i32, i32) {
    %c0_i32 = arith.constant 0 : i32
    %c0_i32_0 = arith.constant 0 : i32
    %c0_i32_1 = arith.constant 0 : i32
    return %c0_i32, %c0_i32_0 : i32, i32
  }
  func.func @transform_10(%arg0: i32) -> (i32, i32) {
    %c0_i32 = arith.constant 0 : i32
    %c0_i32_0 = arith.constant 0 : i32
    %c0_i32_1 = arith.constant 0 : i32
    return %c0_i32, %c0_i32_0 : i32, i32
  }
  func.func @transform_11(%arg0: i32) -> (i32, i32) {
    %c0_i32 = arith.constant 0 : i32
    %c0_i32_0 = arith.constant 0 : i32
    %c0_i32_1 = arith.constant 0 : i32
    return %c0_i32, %c0_i32_0 : i32, i32
  }
  func.func @transform_12(%arg0: i32) -> (i32, i32) {
    %c0_i32 = arith.constant 0 : i32
    %c0_i32_0 = arith.constant 0 : i32
    %c0_i32_1 = arith.constant 0 : i32
    return %c0_i32, %c0_i32_0 : i32, i32
  }
  func.func @transform_13(%arg0: i32) -> (i32, i32) {
    %c0_i32 = arith.constant 0 : i32
    %c0_i32_0 = arith.constant 0 : i32
    return %arg0, %c0_i32 : i32, i32
  }
}

</mosaic_0001>

<llo_original>
// kernel: inference_head_v4.1
$region0: #{inference_head_v4.1}
  #allocation0 [shape = 'u32[]', space=smem, size = 0x4, offset = 0x4, fixed_abs, tag = 'smem constant byte address 0x4 - core index']
  #allocation1 [shape = 'u32[144,128]{1,0:T(1,128)}', space=vmem, size = 0x12000, scoped, tag = 'internal scratch']
  %s0 = inlined_call_operand.vmem [shape: f32[16,32], index: 0, kind: input, shape index: {}]
  %s1 = inlined_call_operand.vmem [shape: f32[16,32], index: 1, kind: input, shape index: {}]
  %s2 = inlined_call_operand.hbm [shape: bf16[32,32], index: 2, kind: input, shape index: {}]
  %s3 = inlined_call_operand.vmem [shape: bf16[32,32], index: 3, kind: input, shape index: {}]
  %s4 = inlined_call_operand.vmem [shape: bf16[32,32], index: 4, kind: input, shape index: {}]
  %s5 = inlined_call_operand.hbm [shape: bf16[32,32], index: 5, kind: input, shape index: {}]
  %s6 = inlined_call_operand.hbm [shape: bf16[32,48], index: 6, kind: input, shape index: {}]
  %s7 = inlined_call_operand.vmem [shape: bf16[32,16], index: 7, kind: input, shape index: {}]
  %s8 = inlined_call_operand.hbm [shape: bf16[16,128], index: 8, kind: input, shape index: {}]
  %s9 = inlined_call_operand.hbm [shape: bf16[16,128], index: 9, kind: input, shape index: {}]
  %s10 = inlined_call_operand.hbm [shape: f32[12,32], index: 10, kind: input, shape index: {}]
  %s11 = inlined_call_operand.hbm [shape: f32[6,16], index: 11, kind: input, shape index: {}]
  %s12 = inlined_call_operand.vmem [shape: f32[1,128], index: 12, kind: input, shape index: {}]
  %s13 = inlined_call_operand.vmem [shape: bf16[16,128], index: 13, kind: output, shape index: {}]
  %s14 = sld [smem:[#allocation0]]
  $region113: #{inference_head_v4.1} parent=0
    _
  %s16 = ssub.s32 1, %s14
  %s17 = scalar_select 0, %s16, %s14
  $region1: #{inference_head_v4.1} parent=0
    #allocation2 [shape = 'u8[8192]{0}', space=vmem, size = 0x2000, scoped, tag = 'input window, operand 2, single buffered']
    #allocation3 [shape = 's32[2]{0}', space=sflag, size = 0x8, scoped, tag = 'scoped memory for inference_head_v4.1']
    #allocation4 [shape = 'u8[8192]{0}', space=vmem, size = 0x2000, scoped, tag = 'input window, operand 5, single buffered']
    #allocation5 [shape = 's32[1]{0}', space=sflag, size = 0x4, scoped, tag = 'scoped memory for inference_head_v4.1']
    #allocation6 [shape = 'u8[8192]{0}', space=vmem, size = 0x2000, scoped, tag = 'input window, operand 6, single buffered']
    #allocation7 [shape = 'u8[4096]{0}', space=vmem, size = 0x1000, scoped, tag = 'input window, operand 8, single buffered']
    #allocation8 [shape = 's32[1]{0}', space=sflag, size = 0x4, scoped, tag = 'scoped memory for inference_head_v4.1']
    #allocation9 [shape = 'u8[4096]{0}', space=vmem, size = 0x1000, scoped, tag = 'input window, operand 9, single buffered']
    #allocation10 [shape = 'u8[8192]{0}', space=vmem, size = 0x2000, scoped, tag = 'input window, operand 10, single buffered']
    #allocation11 [shape = 's32[1]{0}', space=sflag, size = 0x4, scoped, tag = 'scoped memory for inference_head_v4.1']
    #allocation12 [shape = 'u8[4096]{0}', space=vmem, size = 0x1000, scoped, tag = 'input window, operand 11, single buffered']
    %18 = vsyncpa [#allocation3], 0
    %19 = vsyncpa [#allocation5], 0
    %20 = vsyncpa [#allocation8], 0
    %21 = vsyncpa [#allocation11], 0
    loop: start=0, step=1, limit=4
    $region2: #{inference_head_v4.1} parent=1 // loop_pre_header
      _
    $region3: #{inference_head_v4.1} parent=1 // loop_header
      %s23 = sphi 0, %s27
      %p24 = scmp.ge.s32.totalorder %s23, 4
      %s33 = sphi 0, %s35
      %s36 = sphi 0, %s33
      %s37 = sphi 0, %s36
      %s53 = sphi 0, %s37
      %s59 = sphi 0, %s61
      %s62 = sphi 0, %s59
      %s63 = sphi 0, %s62
      %s79 = sphi 0, %s63
      %s83 = sphi 0, %s83
      %s85 = sphi 0, %s83
      %s86 = sphi 0, %s85
      %s100 = sphi 0, %s86
      %s104 = sphi 0, %s104
      %s106 = sphi 0, %s104
      %s107 = sphi 0, %s106
      %s121 = sphi 0, %s107
      %s125 = sphi 0, %s125
      %s127 = sphi 0, %s125
      %s128 = sphi 0, %s127
      %s142 = sphi 0, %s128
      %s146 = sphi 0, %s146
      %s148 = sphi 0, %s146
      %s149 = sphi 0, %s148
      %s163 = sphi 0, %s149
      %s167 = sphi 0, %s167
      %s169 = sphi 0, %s167
      %s170 = sphi 0, %s169
      %s184 = sphi 0, %s170
      %s188 = sphi 0, %s188
      %s190 = sphi 0, %s188
      %s191 = sphi 0, %s190
      %s205 = sphi 0, %s191
      %s209 = sphi 0, %s209
      %s211 = sphi 0, %s209
      %s212 = sphi 0, %s211
      %s226 = sphi 0, %s212
      %s230 = sphi 0, %s230
      %s232 = sphi 0, %s230
      %s233 = sphi 0, %s232
      %s247 = sphi 0, %s233
      %s251 = sphi 0, %s251
      %s253 = sphi 0, %s251
      %s254 = sphi 0, %s253
      %s268 = sphi 0, %s254
      %s272 = sphi 0, %s272
      %s274 = sphi 0, %s272
      %s275 = sphi 0, %s274
      %s289 = sphi 0, %s275
      %s293 = sphi 0, %s293
      %s295 = sphi 0, %s293
      %s296 = sphi 0, %s295
      %s310 = sphi 0, %s296
      %s316 = sphi 0, %s318
      %s319 = sphi 0, %s316
      %s320 = sphi 0, %s319
      %s336 = sphi 0, %s320
    $region4: #{inference_head_v4.1} parent=1 // loop_header_branch
      %26 = sbr.rel (%p24) target = $region8
    $region5: #{inference_head_v4.1} parent=1 // loop_body
      %s28 = ssub.s32 %s23, 1
      %s29 = ssub.s32 %s23, 2
      %s30 = sadd.s32 %s23, 1
      %s31 = ssub.s32 %s23, %s30
      %p32 = scmp.eq.s32.totalorder %s31, 0
      %s34 = sadd.s32 %s33, 1
      %s35 = scalar_select %p32, %s33, %s34
      %p38 = pneg %p32
      %p39 = scmp.eq.s32.totalorder %s23, 1
      %p40 = por %p38, %p39
      %p41 = scmp.ne.s32.totalorder %s33, %s36
      %p42 = scmp.eq.s32.totalorder %s23, 0
      %p43 = por %p41, %p42
      %p44 = scmp.ne.s32.totalorder %s33, %s36
      %p45 = scmp.eq.s32.totalorder %s28, 1
      %p46 = por %p44, %p45
      %p47 = scmp.ne.s32.totalorder %s36, %s37
      %p48 = scmp.eq.s32.totalorder %s28, 0
      %p49 = por %p47, %p48
      %p50 = scmp.ne.s32.totalorder %s36, %s37
      %p51 = scmp.eq.s32.totalorder %s29, 1
      %p52 = por %p50, %p51
      %p54 = scmp.ne.s32.totalorder %s37, %s53
      %p55 = scmp.eq.s32.totalorder %s29, 0
      %p56 = por %p54, %p55
      %s57 = ssub.s32 %s23, %s30
      %p58 = scmp.eq.s32.totalorder %s57, 0
      %s60 = sadd.s32 %s59, 1
      %s61 = scalar_select %p58, %s59, %s60
      %p64 = pneg %p58
      %p65 = scmp.eq.s32.totalorder %s23, 1
      %p66 = por %p64, %p65
      %p67 = scmp.ne.s32.totalorder %s59, %s62
      %p68 = scmp.eq.s32.totalorder %s23, 0
      %p69 = por %p67, %p68
      %p70 = scmp.ne.s32.totalorder %s59, %s62
      %p71 = scmp.eq.s32.totalorder %s28, 1
      %p72 = por %p70, %p71
      %p73 = scmp.ne.s32.totalorder %s62, %s63
      %p74 = scmp.eq.s32.totalorder %s28, 0
      %p75 = por %p73, %p74
      %p76 = scmp.ne.s32.totalorder %s62, %s63
      %p77 = scmp.eq.s32.totalorder %s29, 1
      %p78 = por %p76, %p77
      %p80 = scmp.ne.s32.totalorder %s63, %s79
      %p81 = scmp.eq.s32.totalorder %s29, 0
      %p82 = por %p80, %p81
      %s84 = sadd.s32 %s83, 1
      %p87 = scmp.eq.s32.totalorder %s23, 1
      %p88 = scmp.ne.s32.totalorder %s83, %s85
      %p89 = scmp.eq.s32.totalorder %s23, 0
      %p90 = por %p88, %p89
      %p91 = scmp.ne.s32.totalorder %s83, %s85
      %p92 = scmp.eq.s32.totalorder %s28, 1
      %p93 = por %p91, %p92
      %p94 = scmp.ne.s32.totalorder %s85, %s86
      %p95 = scmp.eq.s32.totalorder %s28, 0
      %p96 = por %p94, %p95
      %p97 = scmp.ne.s32.totalorder %s85, %s86
      %p98 = scmp.eq.s32.totalorder %s29, 1
      %p99 = por %p97, %p98
      %p101 = scmp.ne.s32.totalorder %s86, %s100
      %p102 = scmp.eq.s32.totalorder %s29, 0
      %p103 = por %p101, %p102
      %s105 = sadd.s32 %s104, 1
      %p108 = scmp.eq.s32.totalorder %s23, 1
      %p109 = scmp.ne.s32.totalorder %s104, %s106
      %p110 = scmp.eq.s32.totalorder %s23, 0
      %p111 = por %p109, %p110
      %p112 = scmp.ne.s32.totalorder %s104, %s106
      %p113 = scmp.eq.s32.totalorder %s28, 1
      %p114 = por %p112, %p113
      %p115 = scmp.ne.s32.totalorder %s106, %s107
      %p116 = scmp.eq.s32.totalorder %s28, 0
      %p117 = por %p115, %p116
      %p118 = scmp.ne.s32.totalorder %s106, %s107
      %p119 = scmp.eq.s32.totalorder %s29, 1
      %p120 = por %p118, %p119
      %p122 = scmp.ne.s32.totalorder %s107, %s121
      %p123 = scmp.eq.s32.totalorder %s29, 0
      %p124 = por %p122, %p123
      %s126 = sadd.s32 %s125, 1
      %p129 = scmp.eq.s32.totalorder %s23, 1
      %p130 = scmp.ne.s32.totalorder %s125, %s127
      %p131 = scmp.eq.s32.totalorder %s23, 0
      %p132 = por %p130, %p131
      %p133 = scmp.ne.s32.totalorder %s125, %s127
      %p134 = scmp.eq.s32.totalorder %s28, 1
      %p135 = por %p133, %p134
      %p136 = scmp.ne.s32.totalorder %s127, %s128
      %p137 = scmp.eq.s32.totalorder %s28, 0
      %p138 = por %p136, %p137
      %p139 = scmp.ne.s32.totalorder %s127, %s128
      %p140 = scmp.eq.s32.totalorder %s29, 1
      %p141 = por %p139, %p140
      %p143 = scmp.ne.s32.totalorder %s128, %s142
      %p144 = scmp.eq.s32.totalorder %s29, 0
      %p145 = por %p143, %p144
      %s147 = sadd.s32 %s146, 1
      %p150 = scmp.eq.s32.totalorder %s23, 1
      %p151 = scmp.ne.s32.totalorder %s146, %s148
      %p152 = scmp.eq.s32.totalorder %s23, 0
      %p153 = por %p151, %p152
      %p154 = scmp.ne.s32.totalorder %s146, %s148
      %p155 = scmp.eq.s32.totalorder %s28, 1
      %p156 = por %p154, %p155
      %p157 = scmp.ne.s32.totalorder %s148, %s149
      %p158 = scmp.eq.s32.totalorder %s28, 0
      %p159 = por %p157, %p158
      %p160 = scmp.ne.s32.totalorder %s148, %s149
      %p161 = scmp.eq.s32.totalorder %s29, 1
      %p162 = por %p160, %p161
      %p164 = scmp.ne.s32.totalorder %s149, %s163
      %p165 = scmp.eq.s32.totalorder %s29, 0
      %p166 = por %p164, %p165
      %s168 = sadd.s32 %s167, 1
      %p171 = scmp.eq.s32.totalorder %s23, 1
      %p172 = scmp.ne.s32.totalorder %s167, %s169
      %p173 = scmp.eq.s32.totalorder %s23, 0
      %p174 = por %p172, %p173
      %p175 = scmp.ne.s32.totalorder %s167, %s169
      %p176 = scmp.eq.s32.totalorder %s28, 1
      %p177 = por %p175, %p176
      %p178 = scmp.ne.s32.totalorder %s169, %s170
      %p179 = scmp.eq.s32.totalorder %s28, 0
      %p180 = por %p178, %p179
      %p181 = scmp.ne.s32.totalorder %s169, %s170
      %p182 = scmp.eq.s32.totalorder %s29, 1
      %p183 = por %p181, %p182
      %p185 = scmp.ne.s32.totalorder %s170, %s184
      %p186 = scmp.eq.s32.totalorder %s29, 0
      %p187 = por %p185, %p186
      %s189 = sadd.s32 %s188, 1
      %p192 = scmp.eq.s32.totalorder %s23, 1
      %p193 = scmp.ne.s32.totalorder %s188, %s190
      %p194 = scmp.eq.s32.totalorder %s23, 0
      %p195 = por %p193, %p194
      %p196 = scmp.ne.s32.totalorder %s188, %s190
      %p197 = scmp.eq.s32.totalorder %s28, 1
      %p198 = por %p196, %p197
      %p199 = scmp.ne.s32.totalorder %s190, %s191
      %p200 = scmp.eq.s32.totalorder %s28, 0
      %p201 = por %p199, %p200
      %p202 = scmp.ne.s32.totalorder %s190, %s191
      %p203 = scmp.eq.s32.totalorder %s29, 1
      %p204 = por %p202, %p203
      %p206 = scmp.ne.s32.totalorder %s191, %s205
      %p207 = scmp.eq.s32.totalorder %s29, 0
      %p208 = por %p206, %p207
      %s210 = sadd.s32 %s209, 1
      %p213 = scmp.eq.s32.totalorder %s23, 1
      %p214 = scmp.ne.s32.totalorder %s209, %s211
      %p215 = scmp.eq.s32.totalorder %s23, 0
      %p216 = por %p214, %p215
      %p217 = scmp.ne.s32.totalorder %s209, %s211
      %p218 = scmp.eq.s32.totalorder %s28, 1
      %p219 = por %p217, %p218
      %p220 = scmp.ne.s32.totalorder %s211, %s212
      %p221 = scmp.eq.s32.totalorder %s28, 0
      %p222 = por %p220, %p221
      %p223 = scmp.ne.s32.totalorder %s211, %s212
      %p224 = scmp.eq.s32.totalorder %s29, 1
      %p225 = por %p223, %p224
      %p227 = scmp.ne.s32.totalorder %s212, %s226
      %p228 = scmp.eq.s32.totalorder %s29, 0
      %p229 = por %p227, %p228
      %s231 = sadd.s32 %s230, 1
      %p234 = scmp.eq.s32.totalorder %s23, 1
      %p235 = scmp.ne.s32.totalorder %s230, %s232
      %p236 = scmp.eq.s32.totalorder %s23, 0
      %p237 = por %p235, %p236
      %p238 = scmp.ne.s32.totalorder %s230, %s232
      %p239 = scmp.eq.s32.totalorder %s28, 1
      %p240 = por %p238, %p239
      %p241 = scmp.ne.s32.totalorder %s232, %s233
      %p242 = scmp.eq.s32.totalorder %s28, 0
      %p243 = por %p241, %p242
      %p244 = scmp.ne.s32.totalorder %s232, %s233
      %p245 = scmp.eq.s32.totalorder %s29, 1
      %p246 = por %p244, %p245
      %p248 = scmp.ne.s32.totalorder %s233, %s247
      %p249 = scmp.eq.s32.totalorder %s29, 0
      %p250 = por %p248, %p249
      %s252 = sadd.s32 %s251, 1
      %p255 = scmp.eq.s32.totalorder %s23, 1
      %p256 = scmp.ne.s32.totalorder %s251, %s253
      %p257 = scmp.eq.s32.totalorder %s23, 0
      %p258 = por %p256, %p257
      %p259 = scmp.ne.s32.totalorder %s251, %s253
      %p260 = scmp.eq.s32.totalorder %s28, 1
      %p261 = por %p259, %p260
      %p262 = scmp.ne.s32.totalorder %s253, %s254
      %p263 = scmp.eq.s32.totalorder %s28, 0
      %p264 = por %p262, %p263
      %p265 = scmp.ne.s32.totalorder %s253, %s254
      %p266 = scmp.eq.s32.totalorder %s29, 1
      %p267 = por %p265, %p266
      %p269 = scmp.ne.s32.totalorder %s254, %s268
      %p270 = scmp.eq.s32.totalorder %s29, 0
      %p271 = por %p269, %p270
      %s273 = sadd.s32 %s272, 1
      %p276 = scmp.eq.s32.totalorder %s23, 1
      %p277 = scmp.ne.s32.totalorder %s272, %s274
      %p278 = scmp.eq.s32.totalorder %s23, 0
      %p279 = por %p277, %p278
      %p280 = scmp.ne.s32.totalorder %s272, %s274
      %p281 = scmp.eq.s32.totalorder %s28, 1
      %p282 = por %p280, %p281
      %p283 = scmp.ne.s32.totalorder %s274, %s275
      %p284 = scmp.eq.s32.totalorder %s28, 0
      %p285 = por %p283, %p284
      %p286 = scmp.ne.s32.totalorder %s274, %s275
      %p287 = scmp.eq.s32.totalorder %s29, 1
      %p288 = por %p286, %p287
      %p290 = scmp.ne.s32.totalorder %s275, %s289
      %p291 = scmp.eq.s32.totalorder %s29, 0
      %p292 = por %p290, %p291
      %s294 = sadd.s32 %s293, 1
      %p297 = scmp.eq.s32.totalorder %s23, 1
      %p298 = scmp.ne.s32.totalorder %s293, %s295
      %p299 = scmp.eq.s32.totalorder %s23, 0
      %p300 = por %p298, %p299
      %p301 = scmp.ne.s32.totalorder %s293, %s295
      %p302 = scmp.eq.s32.totalorder %s28, 1
      %p303 = por %p301, %p302
      %p304 = scmp.ne.s32.totalorder %s295, %s296
      %p305 = scmp.eq.s32.totalorder %s28, 0
      %p306 = por %p304, %p305
      %p307 = scmp.ne.s32.totalorder %s295, %s296
      %p308 = scmp.eq.s32.totalorder %s29, 1
      %p309 = por %p307, %p308
      %p311 = scmp.ne.s32.totalorder %s296, %s310
      %p312 = scmp.eq.s32.totalorder %s29, 0
      %p313 = por %p311, %p312
      %s314 = ssub.s32 %s23, %s30
      %p315 = scmp.eq.s32.totalorder %s314, 0
      %s317 = sadd.s32 %s316, 1
      %s318 = scalar_select %p315, %s316, %s317
      %p321 = pneg %p315
      %p322 = scmp.eq.s32.totalorder %s23, 1
      %p323 = por %p321, %p322
      %p324 = scmp.ne.s32.totalorder %s316, %s319
      %p325 = scmp.eq.s32.totalorder %s23, 0
      %p326 = por %p324, %p325
      %p327 = scmp.ne.s32.totalorder %s316, %s319
      %p328 = scmp.eq.s32.totalorder %s28, 1
      %p329 = por %p327, %p328
      %p330 = scmp.ne.s32.totalorder %s319, %s320
      %p331 = scmp.eq.s32.totalorder %s28, 0
      %p332 = por %p330, %p331
      %p333 = scmp.ne.s32.totalorder %s319, %s320
      %p334 = scmp.eq.s32.totalorder %s29, 1
      %p335 = por %p333, %p334
      %p337 = scmp.ne.s32.totalorder %s320, %s336
      %p338 = scmp.eq.s32.totalorder %s29, 0
      %p339 = por %p337, %p338
      %p340 = scmp.le.s32.totalorder 1, %s23
      %p341 = scmp.lt.s32.totalorder %s23, 3
      %p342 = pnand %p340, %p341
      %p343 = pneg %p342
      // Predicated region
      $region9: #{inference_head_v4.1} parent=5 // pred_check
        _
      $region10: #{inference_head_v4.1} parent=5 // pred_check_branch
        %345 = sbr.rel (%p342) target = $region12
      $region11: #{inference_head_v4.1} parent=5 // pred_region
        %s346 = ssub.s32 %s23, 1
        // Predicated region
        $region13: #{inference_head_v4.1} parent=11 // pred_check
          %p347 = pneg %p96
        $region14: #{inference_head_v4.1} parent=11 // pred_check_branch
          %349 = sbr.rel (%p347) target = $region16
        $region15: #{inference_head_v4.1} parent=11 // pred_region
          %s351 = ssub.s32 256, 256
          %352 = vsyncadd [#allocation3], %s351
          %s353 = sshll.u32 [#allocation2], 4
          %s354 = int_to_ptr.vmem [resolvable:$true] %s353
          %359 = dma.hbm_to_vmem [thread:$0]  %s2, 256, %s354, [#allocation3], 64, 64, 4
        $region16: #{inference_head_v4.1} parent=11 // pred_fallthru
          _
        // Predicated region
        $region17: #{inference_head_v4.1} parent=11 // pred_check
          %p360 = pneg %p117
        $region18: #{inference_head_v4.1} parent=11 // pred_check_branch
          %362 = sbr.rel (%p360) target = $region20
        $region19: #{inference_head_v4.1} parent=11 // pred_region
          _
        $region20: #{inference_head_v4.1} parent=11 // pred_fallthru
          _
        // Predicated region
        $region21: #{inference_head_v4.1} parent=11 // pred_check
          %p363 = pneg %p138
        $region22: #{inference_head_v4.1} parent=11 // pred_check_branch
          %365 = sbr.rel (%p363) target = $region24
        $region23: #{inference_head_v4.1} parent=11 // pred_region
          _
        $region24: #{inference_head_v4.1} parent=11 // pred_fallthru
          _
        // Predicated region
        $region25: #{inference_head_v4.1} parent=11 // pred_check
          %p366 = pneg %p159
        $region26: #{inference_head_v4.1} parent=11 // pred_check_branch
          %368 = sbr.rel (%p366) target = $region28
        $region27: #{inference_head_v4.1} parent=11 // pred_region
          %s370 = ssub.s32 256, 256
          %371 = vsyncadd [#allocation5], %s370
          %s372 = sshll.u32 [#allocation4], 4
          %s373 = int_to_ptr.vmem [resolvable:$true] %s372
          %378 = dma.hbm_to_vmem [thread:$0]  %s5, 256, %s373, [#allocation5], 64, 64, 4
        $region28: #{inference_head_v4.1} parent=11 // pred_fallthru
          _
        // Predicated region
        $region29: #{inference_head_v4.1} parent=11 // pred_check
          %p379 = pneg %p180
        $region30: #{inference_head_v4.1} parent=11 // pred_check_branch
          %381 = sbr.rel (%p379) target = $region32
        $region31: #{inference_head_v4.1} parent=11 // pred_region
          %s383 = ssub.s32 256, 256
          %384 = vsyncadd [#allocation5], %s383
          %s385 = sshll.u32 [#allocation6], 4
          %s386 = int_to_ptr.vmem [resolvable:$true] %s385
          %391 = dma.hbm_to_vmem [thread:$0]  %s6, 256, %s386, [#allocation5], 64, 64, 4
        $region32: #{inference_head_v4.1} parent=11 // pred_fallthru
          _
        // Predicated region
        $region33: #{inference_head_v4.1} parent=11 // pred_check
          %p392 = pneg %p201
        $region34: #{inference_head_v4.1} parent=11 // pred_check_branch
          %394 = sbr.rel (%p392) target = $region36
        $region35: #{inference_head_v4.1} parent=11 // pred_region
          _
        $region36: #{inference_head_v4.1} parent=11 // pred_fallthru
          _
        // Predicated region
        $region37: #{inference_head_v4.1} parent=11 // pred_check
          %p395 = pneg %p222
        $region38: #{inference_head_v4.1} parent=11 // pred_check_branch
          %397 = sbr.rel (%p395) target = $region40
        $region39: #{inference_head_v4.1} parent=11 // pred_region
          %s399 = ssub.s32 128, 128
          %400 = vsyncadd [#allocation8], %s399
          %s401 = sshll.u32 [#allocation7], 4
          %s402 = int_to_ptr.vmem [resolvable:$true] %s401
          %407 = dma.hbm_to_vmem [thread:$0]  %s8, 128, %s402, [#allocation8], 64, 64, 4
        $region40: #{inference_head_v4.1} parent=11 // pred_fallthru
          _
        // Predicated region
        $region41: #{inference_head_v4.1} parent=11 // pred_check
          %p408 = pneg %p243
        $region42: #{inference_head_v4.1} parent=11 // pred_check_branch
          %410 = sbr.rel (%p408) target = $region44
        $region43: #{inference_head_v4.1} parent=11 // pred_region
          %s412 = ssub.s32 128, 128
          %413 = vsyncadd [#allocation8], %s412
          %s414 = sshll.u32 [#allocation9], 4
          %s415 = int_to_ptr.vmem [resolvable:$true] %s414
          %420 = dma.hbm_to_vmem [thread:$0]  %s9, 128, %s415, [#allocation8], 64, 64, 4
        $region44: #{inference_head_v4.1} parent=11 // pred_fallthru
          _
        // Predicated region
        $region45: #{inference_head_v4.1} parent=11 // pred_check
          %p421 = pneg %p264
        $region46: #{inference_head_v4.1} parent=11 // pred_check_branch
          %423 = sbr.rel (%p421) target = $region48
        $region47: #{inference_head_v4.1} parent=11 // pred_region
          %s425 = ssub.s32 256, 256
          %426 = vsyncadd [#allocation11], %s425
          %s427 = sshll.u32 [#allocation10], 4
          %s428 = int_to_ptr.vmem [resolvable:$true] %s427
          %433 = dma.hbm_to_vmem [thread:$0]  %s10, 256, %s428, [#allocation11], 128, 128, 8
        $region48: #{inference_head_v4.1} parent=11 // pred_fallthru
          _
        // Predicated region
        $region49: #{inference_head_v4.1} parent=11 // pred_check
          %p434 = pneg %p285
        $region50: #{inference_head_v4.1} parent=11 // pred_check_branch
          %436 = sbr.rel (%p434) target = $region52
        $region51: #{inference_head_v4.1} parent=11 // pred_region
          %s438 = ssub.s32 128, 128
          %439 = vsyncadd [#allocation11], %s438
          %s441 = sshll.u32 [#allocation12], 4
          %s442 = int_to_ptr.vmem [resolvable:$true] %s441
          %444 = dma.hbm_to_vmem [thread:$0]  %s11, 128, %s442, [#allocation11]
        $region52: #{inference_head_v4.1} parent=11 // pred_fallthru
          _
        // Predicated region
        $region53: #{inference_head_v4.1} parent=11 // pred_check
          %p445 = pneg %p306
        $region54: #{inference_head_v4.1} parent=11 // pred_check_branch
          %447 = sbr.rel (%p445) target = $region56
        $region55: #{inference_head_v4.1} parent=11 // pred_region
          _
        $region56: #{inference_head_v4.1} parent=11 // pred_fallthru
          _
      $region12: #{inference_head_v4.1} parent=5 // pred_fallthru
        _
      %p448 = scmp.lt.s32.totalorder %s23, 2
      // Predicated region
      $region57: #{inference_head_v4.1} parent=5 // pred_check
        %p449 = pneg %p448
      $region58: #{inference_head_v4.1} parent=5 // pred_check_branch
        %451 = sbr.rel (%p449) target = $region60
      $region59: #{inference_head_v4.1} parent=5 // pred_region
        // Predicated region
        $region61: #{inference_head_v4.1} parent=59 // pred_check
          %p452 = pneg %p43
        $region62: #{inference_head_v4.1} parent=59 // pred_check_branch
          %454 = sbr.rel (%p452) target = $region64
        $region63: #{inference_head_v4.1} parent=59 // pred_region
          %p455 = scmp.lt.s32.totalorder %s23, 1
          %s456 = scalar_select %p455, %s23, 1
          %s457 = smul.addr %s456, 8
          %s458 = scalar_lea.vmem %s0, %s457
        $region64: #{inference_head_v4.1} parent=59 // pred_fallthru
          _
        // Predicated region
        $region65: #{inference_head_v4.1} parent=59 // pred_check
          %p459 = pneg %p69
        $region66: #{inference_head_v4.1} parent=59 // pred_check_branch
          %461 = sbr.rel (%p459) target = $region68
        $region67: #{inference_head_v4.1} parent=59 // pred_region
          %p462 = scmp.lt.s32.totalorder %s23, 1
          %s463 = scalar_select %p462, %s23, 1
          %s464 = smul.addr %s463, 8
          %s465 = scalar_lea.vmem %s1, %s464
        $region68: #{inference_head_v4.1} parent=59 // pred_fallthru
          _
      $region60: #{inference_head_v4.1} parent=5 // pred_fallthru
        _
      %p466 = scmp.le.s32.totalorder 1, %s23
      %p467 = scmp.lt.s32.totalorder %s23, 3
      %p468 = pnand %p466, %p467
      %p469 = pneg %p468
      // Predicated region
      $region69: #{inference_head_v4.1} parent=5 // pred_check
        _
      $region70: #{inference_head_v4.1} parent=5 // pred_check_branch
        %471 = sbr.rel (%p468) target = $region72
      $region71: #{inference_head_v4.1} parent=5 // pred_region
        %s472 = ssub.s32 %s23, 1
        // Predicated region
        $region73: #{inference_head_v4.1} parent=71 // pred_check
          %p473 = pneg %p96
        $region74: #{inference_head_v4.1} parent=71 // pred_check_branch
          %475 = sbr.rel (%p473) target = $region76
        $region75: #{inference_head_v4.1} parent=71 // pred_region
          %476 = dma.done [#allocation3], 256
        $region76: #{inference_head_v4.1} parent=71 // pred_fallthru
          _
        // Predicated region
        $region77: #{inference_head_v4.1} parent=71 // pred_check
          %p477 = pneg %p159
        $region78: #{inference_head_v4.1} parent=71 // pred_check_branch
          %479 = sbr.rel (%p477) target = $region80
        $region79: #{inference_head_v4.1} parent=71 // pred_region
          %480 = dma.done [#allocation5], 256
        $region80: #{inference_head_v4.1} parent=71 // pred_fallthru
          _
        // Predicated region
        $region81: #{inference_head_v4.1} parent=71 // pred_check
          %p481 = pneg %p180
        $region82: #{inference_head_v4.1} parent=71 // pred_check_branch
          %483 = sbr.rel (%p481) target = $region84
        $region83: #{inference_head_v4.1} parent=71 // pred_region
          %484 = dma.done [#allocation5], 256
        $region84: #{inference_head_v4.1} parent=71 // pred_fallthru
          _
        // Predicated region
        $region85: #{inference_head_v4.1} parent=71 // pred_check
          %p485 = pneg %p222
        $region86: #{inference_head_v4.1} parent=71 // pred_check_branch
          %487 = sbr.rel (%p485) target = $region88
        $region87: #{inference_head_v4.1} parent=71 // pred_region
          %488 = dma.done [#allocation8], 128
        $region88: #{inference_head_v4.1} parent=71 // pred_fallthru
          _
        // Predicated region
        $region89: #{inference_head_v4.1} parent=71 // pred_check
          %p489 = pneg %p243
        $region90: #{inference_head_v4.1} parent=71 // pred_check_branch
          %491 = sbr.rel (%p489) target = $region92
        $region91: #{inference_head_v4.1} parent=71 // pred_region
          %492 = dma.done [#allocation8], 128
        $region92: #{inference_head_v4.1} parent=71 // pred_fallthru
          _
        // Predicated region
        $region93: #{inference_head_v4.1} parent=71 // pred_check
          %p493 = pneg %p264
        $region94: #{inference_head_v4.1} parent=71 // pred_check_branch
          %495 = sbr.rel (%p493) target = $region96
        $region95: #{inference_head_v4.1} parent=71 // pred_region
          %496 = dma.done [#allocation11], 256
        $region96: #{inference_head_v4.1} parent=71 // pred_fallthru
          _
        // Predicated region
        $region97: #{inference_head_v4.1} parent=71 // pred_check
          %p497 = pneg %p285
        $region98: #{inference_head_v4.1} parent=71 // pred_check_branch
          %499 = sbr.rel (%p497) target = $region100
        $region99: #{inference_head_v4.1} parent=71 // pred_region
          %500 = dma.done [#allocation11], 128
        $region100: #{inference_head_v4.1} parent=71 // pred_fallthru
          _
        %p501 = scmp.lt.s32.totalorder %s28, 1
        %s502 = scalar_select %p501, %s28, 1
        %s503 = smul.addr %s502, 8
        %s504 = scalar_lea.vmem %s0, %s503
        %p505 = pneg %p49
        %p506 = pneg %p46
        %p507 = scmp.lt.s32.totalorder %s28, 1
        %s508 = scalar_select %p507, %s28, 1
        %s509 = smul.addr %s508, 8
        %s510 = scalar_lea.vmem %s1, %s509
        %p511 = pneg %p75
        %p512 = pneg %p72
        %p513 = pneg %p96
        %p514 = pneg %p93
        %p515 = pneg %p117
        %p516 = pneg %p114
        %p517 = pneg %p138
        %p518 = pneg %p135
        %p519 = pneg %p159
        %p520 = pneg %p156
        %p521 = pneg %p180
        %p522 = pneg %p177
        %p523 = pneg %p201
        %p524 = pneg %p198
        %p525 = pneg %p222
        %p526 = pneg %p219
        %p527 = pneg %p243
        %p528 = pneg %p240
        %p529 = pneg %p264
        %p530 = pneg %p261
        %p531 = pneg %p285
        %p532 = pneg %p282
        %p533 = pneg %p306
        %p534 = pneg %p303
        %p535 = pneg %p332
        %p536 = pneg %p329
        %p537 = scmp.lt.s32.totalorder %s28, 1
        %s538 = scalar_select %p537, %s28, 1
        %s539 = smul.addr %s538, 4
        %s540 = scalar_lea.vmem %s13, %s539
        %p541 = scmp.lt.s32.totalorder %s28, 1
        %s542 = scalar_select %p541, %s28, 1
        %s543 = smul.addr %s542, 8
        %s544 = scalar_lea.vmem %s0, %s543
        %p545 = scmp.lt.s32.totalorder %s28, 1
        %s546 = scalar_select %p545, %s28, 1
        %s547 = smul.addr %s546, 8
        %s548 = scalar_lea.vmem %s1, %s547
        %p549 = scmp.lt.s32.totalorder %s28, 1
        %s550 = scalar_select %p549, %s28, 1
        %s551 = smul.addr %s550, 4
        %s552 = scalar_lea.vmem %s13, %s551
        %v554 = vld [vmem:[#allocation10] sm:$0xff]
        %v555 = vld [vmem:[#allocation10 + $0x8] sm:$0xf]
        %v556 = vld [vmem:[#allocation12] sm:$0x3f]
        %v557 = vld [vmem:[%s544] sm:$0xff]
        %v558 = vpack.c.bf16 %v557, %v557
        %v559 = vld [vmem:[%s548] sm:$0xff]
        %v560 = vpack.c.bf16 %v559, %v559
        %v561 = vld [vmem:[#allocation2] sm:$0xf]
        %v562 = vld [vmem:[#allocation2 + $0x4] sm:$0xf]
        %v563 = vld [vmem:[#allocation2 + $0x8] sm:$0xf]
        %v564 = vld [vmem:[#allocation2 + $0xc] sm:$0xf]
        %v565 = vlaneseq
        %v566 = vshrl.u32 %v565, 7
        %v567 = vsub.s32 0, %v566
        %v568 = vrot.slane %v554, %v567
        %v573 = vunpack.c.l.b16 %v561
        %v574 = vunpack.c.l.b16 %v562
        %v575 = vunpack.c.l.b16 %v563
        %v576 = vunpack.c.l.b16 %v564
        %v577 = vpack.c.b16 %v574, %v573
        %v578 = vpack.c.b16 %v576, %v575
        %vm581 = vcmask 261120
        %v583 = vsel %vm581, %v558, 0
        %585 = vmatprep.subr.bf16.mxu0 0
        %586 = vmatpush1.bf16.msra.mxu0 %v577
        %587 = vmatprep.subr.bf16.mxu0 0
        %588 = vmatpush1.bf16.msra.mxu0 %v578
        %589 = vmatprep.subr.bf16.mxu0 0
        %590 = vmatpush1.bf16.msra.mxu0 0
        %591 = vmatprep.subr.bf16.mxu0 0
        %592 = vmatpush1.bf16.msra.mxu0 0
        %593 = vmatprep.subr.bf16.mxu0 0
        %594 = vmatpush1.bf16.msra.mxu0 0
        %595 = vmatprep.subr.bf16.mxu0 0
        %596 = vmatpush1.bf16.msra.mxu0 0
        %597 = vmatprep.subr.bf16.mxu0 0
        %598 = vmatpush1.bf16.msra.mxu0 0
        %599 = vmatprep.subr.bf16.mxu0 0
        %600 = vmatpush1.bf16.msra.mxu0 0
        %601 = vmatprep.subr.bf16.mxu0 0
        %602 = vmatpush1.bf16.msra.mxu0 0
        %603 = vmatprep.subr.bf16.mxu0 0
        %604 = vmatpush1.bf16.msra.mxu0 0
        %605 = vmatprep.subr.bf16.mxu0 0
        %606 = vmatpush1.bf16.msra.mxu0 0
        %607 = vmatprep.subr.bf16.mxu0 0
        %608 = vmatpush1.bf16.msra.mxu0 0
        %609 = vmatprep.subr.bf16.mxu0 0
        %610 = vmatpush1.bf16.msra.mxu0 0
        %611 = vmatprep.subr.bf16.mxu0 0
        %612 = vmatpush1.bf16.msra.mxu0 0
        %613 = vmatprep.subr.bf16.mxu0 0
        %614 = vmatpush1.bf16.msra.mxu0 0
        %615 = vmatprep.subr.bf16.mxu0 0
        %616 = vmatpush1.bf16.msra.mxu0 0
        %617 = vmatprep.mubr.bf16.mxu0 0
        %618 = vmatmul.mubr.bf16.gmra.mrb[0].mxu0 %v583
        %v619 = vpop.f32.mrb[0].mxu0
        %v620 = vadd.f32 %v568, %v619
        %v621 = vpop.f32.mrb[0].mxu0
        %v622 = vpop.f32.mrb[0].mxu0
        %v623 = vpop.f32.mrb[0].mxu0
        %624 = vdwg.mxu0
        %v625 = vmax.f32 %v620, 0.0
        %v626 = vsel %vm581, %v625, 0.0
        %627 = vadd.xlane.f32.xlu0 %v626
        %v628 = vpop.xlane.xlu0 %627
        %v629 = vrcp.pop 32.0
        %v630 = vmul.f32 %v628, %v629
        %v631 = vmul.f32 %v625, %v625
        %v632 = vsel %vm581, %v631, 0.0
        %633 = vadd.xlane.f32.xlu0 %v632
        %v634 = vpop.xlane.xlu0 %633
        %v635 = vmul.f32 %v634, %v629
        %v636 = vmul.f32 %v630, %v630
        %v637 = vsub.f32 %v635, %v636
        %v638 = vmax.f32 %v637, 0.0
        %v639 = vsub.f32 %v625, %v630
        %v640 = vadd.f32 %v638, 1e-12
        %v641 = vrsqrt.pop %v640
        %v642 = vmul.f32 %v639, %v641
        %v643 = vlaneseq
        %v644 = vshrl.u32 %v643, 7
        %v645 = vsub.s32 1, %v644
        %v646 = vrot.slane %v554, %v645
        %v647 = vmul.f32 %v642, %v646
        %v648 = vlaneseq
        %v649 = vshrl.u32 %v648, 7
        %v650 = vsub.s32 2, %v649
        %v651 = vrot.slane %v554, %v650
        %v652 = vadd.f32 %v647, %v651
        %v653 = vld [vmem:[%s3] sm:$0xf]
        %v654 = vld [vmem:[%s3 + $0x4] sm:$0xf]
        %v655 = vld [vmem:[%s3 + $0x8] sm:$0xf]
        %v656 = vld [vmem:[%s3 + $0xc] sm:$0xf]
        %v657 = vpack.c.bf16 %v652, %v652
        %v658 = vld [vmem:[%s4] sm:$0xf]
        %v659 = vld [vmem:[%s4 + $0x4] sm:$0xf]
        %v660 = vld [vmem:[%s4 + $0x8] sm:$0xf]
        %v661 = vld [vmem:[%s4 + $0xc] sm:$0xf]
        %v666 = vunpack.c.l.b16 %v658
        %v667 = vunpack.c.l.b16 %v659
        %v668 = vunpack.c.l.b16 %v660
        %v669 = vunpack.c.l.b16 %v661
        %v670 = vpack.c.b16 %v667, %v666
        %v671 = vpack.c.b16 %v669, %v668
        %v675 = vsel %vm581, %v560, 0
        %677 = vmatprep.subr.bf16.mxu0 0
        %678 = vmatpush1.bf16.msra.mxu0 %v670
        %679 = vmatprep.subr.bf16.mxu0 0
        %680 = vmatpush1.bf16.msra.mxu0 %v671
        %681 = vmatprep.subr.bf16.mxu0 0
        %682 = vmatpush1.bf16.msra.mxu0 0
        %683 = vmatprep.subr.bf16.mxu0 0
        %684 = vmatpush1.bf16.msra.mxu0 0
        %685 = vmatprep.subr.bf16.mxu0 0
        %686 = vmatpush1.bf16.msra.mxu0 0
        %687 = vmatprep.subr.bf16.mxu0 0
        %688 = vmatpush1.bf16.msra.mxu0 0
        %689 = vmatprep.subr.bf16.mxu0 0
        %690 = vmatpush1.bf16.msra.mxu0 0
        %691 = vmatprep.subr.bf16.mxu0 0
        %692 = vmatpush1.bf16.msra.mxu0 0
        %693 = vmatprep.subr.bf16.mxu0 0
        %694 = vmatpush1.bf16.msra.mxu0 0
        %695 = vmatprep.subr.bf16.mxu0 0
        %696 = vmatpush1.bf16.msra.mxu0 0
        %697 = vmatprep.subr.bf16.mxu0 0
        %698 = vmatpush1.bf16.msra.mxu0 0
        %699 = vmatprep.subr.bf16.mxu0 0
        %700 = vmatpush1.bf16.msra.mxu0 0
        %701 = vmatprep.subr.bf16.mxu0 0
        %702 = vmatpush1.bf16.msra.mxu0 0
        %703 = vmatprep.subr.bf16.mxu0 0
        %704 = vmatpush1.bf16.msra.mxu0 0
        %705 = vmatprep.subr.bf16.mxu0 0
        %706 = vmatpush1.bf16.msra.mxu0 0
        %707 = vmatprep.subr.bf16.mxu0 0
        %708 = vmatpush1.bf16.msra.mxu0 0
        %709 = vmatprep.mubr.bf16.mxu0 0
        %710 = vmatmul.mubr.bf16.gmra.mrb[0].mxu0 %v675
        %v711 = vpop.f32.mrb[0].mxu0
        %v712 = vadd.f32 0.0, %v711
        %v713 = vpop.f32.mrb[0].mxu0
        %v714 = vpop.f32.mrb[0].mxu0
        %v715 = vpop.f32.mrb[0].mxu0
        %716 = vdwg.mxu0
        %v721 = vunpack.c.l.b16 %v653
        %v722 = vunpack.c.l.b16 %v654
        %v723 = vunpack.c.l.b16 %v655
        %v724 = vunpack.c.l.b16 %v656
        %v725 = vpack.c.b16 %v722, %v721
        %v726 = vpack.c.b16 %v724, %v723
        %v730 = vsel %vm581, %v657, 0
        %732 = vmatprep.subr.bf16.mxu0 0
        %733 = vmatpush1.bf16.msra.mxu0 %v725
        %734 = vmatprep.subr.bf16.mxu0 0
        %735 = vmatpush1.bf16.msra.mxu0 %v726
        %736 = vmatprep.subr.bf16.mxu0 0
        %737 = vmatpush1.bf16.msra.mxu0 0
        %738 = vmatprep.subr.bf16.mxu0 0
        %739 = vmatpush1.bf16.msra.mxu0 0
        %740 = vmatprep.subr.bf16.mxu0 0
        %741 = vmatpush1.bf16.msra.mxu0 0
        %742 = vmatprep.subr.bf16.mxu0 0
        %743 = vmatpush1.bf16.msra.mxu0 0
        %744 = vmatprep.subr.bf16.mxu0 0
        %745 = vmatpush1.bf16.msra.mxu0 0
        %746 = vmatprep.subr.bf16.mxu0 0
        %747 = vmatpush1.bf16.msra.mxu0 0
        %748 = vmatprep.subr.bf16.mxu0 0
        %749 = vmatpush1.bf16.msra.mxu0 0
        %750 = vmatprep.subr.bf16.mxu0 0
        %751 = vmatpush1.bf16.msra.mxu0 0
        %752 = vmatprep.subr.bf16.mxu0 0
        %753 = vmatpush1.bf16.msra.mxu0 0
        %754 = vmatprep.subr.bf16.mxu0 0
        %755 = vmatpush1.bf16.msra.mxu0 0
        %756 = vmatprep.subr.bf16.mxu0 0
        %757 = vmatpush1.bf16.msra.mxu0 0
        %758 = vmatprep.subr.bf16.mxu0 0
        %759 = vmatpush1.bf16.msra.mxu0 0
        %760 = vmatprep.subr.bf16.mxu0 0
        %761 = vmatpush1.bf16.msra.mxu0 0
        %762 = vmatprep.subr.bf16.mxu0 0
        %763 = vmatpush1.bf16.msra.mxu0 0
        %764 = vmatprep.mubr.bf16.mxu0 0
        %765 = vmatmul.mubr.bf16.gmra.mrb[0].mxu0 %v730
        %v766 = vpop.f32.mrb[0].mxu0
        %v767 = vadd.f32 %v712, %v766
        %v768 = vpop.f32.mrb[0].mxu0
        %v769 = vpop.f32.mrb[0].mxu0
        %v770 = vpop.f32.mrb[0].mxu0
        %771 = vdwg.mxu0
        %v772 = vlaneseq
        %v773 = vshrl.u32 %v772, 7
        %v774 = vsub.s32 3, %v773
        %v775 = vrot.slane %v554, %v774
        %v776 = vadd.f32 %v767, %v775
        %v777 = vmax.f32 %v776, 0.0
        %v778 = vsel %vm581, %v777, 0.0
        %779 = vadd.xlane.f32.xlu0 %v778
        %v780 = vpop.xlane.xlu0 %779
        %v781 = vmul.f32 %v780, %v629
        %v782 = vmul.f32 %v777, %v777
        %v783 = vsel %vm581, %v782, 0.0
        %784 = vadd.xlane.f32.xlu0 %v783
        %v785 = vpop.xlane.xlu0 %784
        %v786 = vmul.f32 %v785, %v629
        %v787 = vmul.f32 %v781, %v781
        %v788 = vsub.f32 %v786, %v787
        %v789 = vmax.f32 %v788, 0.0
        %v790 = vsub.f32 %v777, %v781
        %v791 = vadd.f32 %v789, 1e-12
        %v792 = vrsqrt.pop %v791
        %v793 = vmul.f32 %v790, %v792
        %v794 = vlaneseq
        %v795 = vshrl.u32 %v794, 7
        %v796 = vsub.s32 4, %v795
        %v797 = vrot.slane %v554, %v796
        %v798 = vmul.f32 %v793, %v797
        %v799 = vlaneseq
        %v800 = vshrl.u32 %v799, 7
        %v801 = vsub.s32 5, %v800
        %v802 = vrot.slane %v554, %v801
        %v803 = vadd.f32 %v798, %v802
        %v804 = vld [vmem:[#allocation4] sm:$0xf]
        %v805 = vld [vmem:[#allocation4 + $0x4] sm:$0xf]
        %v806 = vld [vmem:[#allocation4 + $0x8] sm:$0xf]
        %v807 = vld [vmem:[#allocation4 + $0xc] sm:$0xf]
        %v808 = vpack.c.bf16 %v803, %v803
        %v809 = vlaneseq
        %v810 = vshrl.u32 %v809, 7
        %v811 = vsub.s32 6, %v810
        %v812 = vrot.slane %v554, %v811
        %v817 = vunpack.c.l.b16 %v804
        %v818 = vunpack.c.l.b16 %v805
        %v819 = vunpack.c.l.b16 %v806
        %v820 = vunpack.c.l.b16 %v807
        %v821 = vpack.c.b16 %v818, %v817
        %v822 = vpack.c.b16 %v820, %v819
        %v826 = vsel %vm581, %v808, 0
        %828 = vmatprep.subr.bf16.mxu0 0
        %829 = vmatpush1.bf16.msra.mxu0 %v821
        %830 = vmatprep.subr.bf16.mxu0 0
        %831 = vmatpush1.bf16.msra.mxu0 %v822
        %832 = vmatprep.subr.bf16.mxu0 0
        %833 = vmatpush1.bf16.msra.mxu0 0
        %834 = vmatprep.subr.bf16.mxu0 0
        %835 = vmatpush1.bf16.msra.mxu0 0
        %836 = vmatprep.subr.bf16.mxu0 0
        %837 = vmatpush1.bf16.msra.mxu0 0
        %838 = vmatprep.subr.bf16.mxu0 0
        %839 = vmatpush1.bf16.msra.mxu0 0
        %840 = vmatprep.subr.bf16.mxu0 0
        %841 = vmatpush1.bf16.msra.mxu0 0
        %842 = vmatprep.subr.bf16.mxu0 0
        %843 = vmatpush1.bf16.msra.mxu0 0
        %844 = vmatprep.subr.bf16.mxu0 0
        %845 = vmatpush1.bf16.msra.mxu0 0
        %846 = vmatprep.subr.bf16.mxu0 0
        %847 = vmatpush1.bf16.msra.mxu0 0
        %848 = vmatprep.subr.bf16.mxu0 0
        %849 = vmatpush1.bf16.msra.mxu0 0
        %850 = vmatprep.subr.bf16.mxu0 0
        %851 = vmatpush1.bf16.msra.mxu0 0
        %852 = vmatprep.subr.bf16.mxu0 0
        %853 = vmatpush1.bf16.msra.mxu0 0
        %854 = vmatprep.subr.bf16.mxu0 0
        %855 = vmatpush1.bf16.msra.mxu0 0
        %856 = vmatprep.subr.bf16.mxu0 0
        %857 = vmatpush1.bf16.msra.mxu0 0
        %858 = vmatprep.subr.bf16.mxu0 0
        %859 = vmatpush1.bf16.msra.mxu0 0
        %860 = vmatprep.mubr.bf16.mxu0 0
        %861 = vmatmul.mubr.bf16.gmra.mrb[0].mxu0 %v826
        %v862 = vpop.f32.mrb[0].mxu0
        %v863 = vadd.f32 %v812, %v862
        %v864 = vpop.f32.mrb[0].mxu0
        %v865 = vpop.f32.mrb[0].mxu0
        %v866 = vpop.f32.mrb[0].mxu0
        %867 = vdwg.mxu0
        %v868 = vmax.f32 %v863, 0.0
        %v869 = vsel %vm581, %v868, 0.0
        %870 = vadd.xlane.f32.xlu0 %v869
        %v871 = vpop.xlane.xlu0 %870
        %v872 = vmul.f32 %v871, %v629
        %v873 = vmul.f32 %v868, %v868
        %v874 = vsel %vm581, %v873, 0.0
        %875 = vadd.xlane.f32.xlu0 %v874
        %v876 = vpop.xlane.xlu0 %875
        %v877 = vmul.f32 %v876, %v629
        %v878 = vmul.f32 %v872, %v872
        %v879 = vsub.f32 %v877, %v878
        %v880 = vmax.f32 %v879, 0.0
        %v881 = vsub.f32 %v868, %v872
        %v882 = vadd.f32 %v880, 1e-12
        %v883 = vrsqrt.pop %v882
        %v884 = vmul.f32 %v881, %v883
        %v885 = vlaneseq
        %v886 = vshrl.u32 %v885, 7
        %v887 = vsub.s32 7, %v886
        %v888 = vrot.slane %v554, %v887
        %v889 = vmul.f32 %v884, %v888
        %v890 = vlaneseq
        %v891 = vshrl.u32 %v890, 7
        %v892 = vsub.s32 0, %v891
        %v893 = vrot.slane %v555, %v892
        %v894 = vadd.f32 %v889, %v893
        %v895 = vld [vmem:[#allocation6] sm:$0xf]
        %v896 = vld [vmem:[#allocation6 + $0x4] sm:$0xf]
        %v897 = vld [vmem:[#allocation6 + $0x8] sm:$0xf]
        %v898 = vld [vmem:[#allocation6 + $0xc] sm:$0xf]
        %v899 = vpack.c.bf16 %v894, %v894
        %v904 = vunpack.c.l.b16 %v895
        %v905 = vunpack.c.l.b16 %v896
        %v906 = vunpack.c.l.b16 %v897
        %v907 = vunpack.c.l.b16 %v898
        %v908 = vpack.c.b16 %v905, %v904
        %v909 = vpack.c.b16 %v907, %v906
        %v913 = vsel %vm581, %v899, 0
        %915 = vmatprep.subr.bf16.mxu0 0
        %916 = vmatpush1.bf16.msra.mxu0 %v908
        %917 = vmatprep.subr.bf16.mxu0 0
        %918 = vmatpush1.bf16.msra.mxu0 %v909
        %919 = vmatprep.subr.bf16.mxu0 0
        %920 = vmatpush1.bf16.msra.mxu0 0
        %921 = vmatprep.subr.bf16.mxu0 0
        %922 = vmatpush1.bf16.msra.mxu0 0
        %923 = vmatprep.subr.bf16.mxu0 0
        %924 = vmatpush1.bf16.msra.mxu0 0
        %925 = vmatprep.subr.bf16.mxu0 0
        %926 = vmatpush1.bf16.msra.mxu0 0
        %927 = vmatprep.subr.bf16.mxu0 0
        %928 = vmatpush1.bf16.msra.mxu0 0
        %929 = vmatprep.subr.bf16.mxu0 0
        %930 = vmatpush1.bf16.msra.mxu0 0
        %931 = vmatprep.subr.bf16.mxu0 0
        %932 = vmatpush1.bf16.msra.mxu0 0
        %933 = vmatprep.subr.bf16.mxu0 0
        %934 = vmatpush1.bf16.msra.mxu0 0
        %935 = vmatprep.subr.bf16.mxu0 0
        %936 = vmatpush1.bf16.msra.mxu0 0
        %937 = vmatprep.subr.bf16.mxu0 0
        %938 = vmatpush1.bf16.msra.mxu0 0
        %939 = vmatprep.subr.bf16.mxu0 0
        %940 = vmatpush1.bf16.msra.mxu0 0
        %941 = vmatprep.subr.bf16.mxu0 0
        %942 = vmatpush1.bf16.msra.mxu0 0
        %943 = vmatprep.subr.bf16.mxu0 0
        %944 = vmatpush1.bf16.msra.mxu0 0
        %945 = vmatprep.subr.bf16.mxu0 0
        %946 = vmatpush1.bf16.msra.mxu0 0
        %947 = vmatprep.mubr.bf16.mxu0 0
        %948 = vmatmul.mubr.bf16.gmra.mrb[0].mxu0 %v913
        %v949 = vpop.f32.mrb[0].mxu0
        %v950 = vadd.f32 0.0, %v949
        %v951 = vpop.f32.mrb[0].mxu0
        %v952 = vpop.f32.mrb[0].mxu0
        %v953 = vpop.f32.mrb[0].mxu0
        %954 = vdwg.mxu0
        %v955 = vlaneseq
        %v956 = vshrl.u32 %v955, 7
        %v957 = vsub.s32 1, %v956
        %v958 = vrot.slane %v555, %v957
        %v959 = vadd.f32 %v950, %v958
        %v960 = vmax.f32 %v959, 0.0
        %v961 = vsel %vm581, %v960, 0.0
        %962 = vadd.xlane.f32.xlu0 %v961
        %v963 = vpop.xlane.xlu0 %962
        %v964 = vmul.f32 %v963, %v629
        %v965 = vmul.f32 %v960, %v960
        %v966 = vsel %vm581, %v965, 0.0
        %967 = vadd.xlane.f32.xlu0 %v966
        %v968 = vpop.xlane.xlu0 %967
        %v969 = vmul.f32 %v968, %v629
        %v970 = vmul.f32 %v964, %v964
        %v971 = vsub.f32 %v969, %v970
        %v972 = vmax.f32 %v971, 0.0
        %v973 = vsub.f32 %v960, %v964
        %v974 = vadd.f32 %v972, 1e-12
        %v975 = vrsqrt.pop %v974
        %v976 = vmul.f32 %v973, %v975
        %v977 = vlaneseq
        %v978 = vshrl.u32 %v977, 7
        %v979 = vsub.s32 2, %v978
        %v980 = vrot.slane %v555, %v979
        %v981 = vmul.f32 %v976, %v980
        %v982 = vlaneseq
        %v983 = vshrl.u32 %v982, 7
        %v984 = vsub.s32 3, %v983
        %v985 = vrot.slane %v555, %v984
        %v986 = vadd.f32 %v981, %v985
        %v987 = vld [vmem:[%s7] sm:$0xf]
        %v988 = vld [vmem:[%s7 + $0x4] sm:$0xf]
        %v989 = vld [vmem:[%s7 + $0x8] sm:$0xf]
        %v990 = vld [vmem:[%s7 + $0xc] sm:$0xf]
        %v991 = vpack.c.bf16 %v986, %v986
        %v992 = vlaneseq
        %v993 = vshrl.u32 %v992, 7
        %v994 = vsub.s32 3, %v993
        %v995 = vrot.slane %v556, %v994
        %v1000 = vunpack.c.l.b16 %v987
        %v1001 = vunpack.c.l.b16 %v988
        %v1002 = vunpack.c.l.b16 %v989
        %v1003 = vunpack.c.l.b16 %v990
        %v1004 = vpack.c.b16 %v1001, %v1000
        %v1005 = vpack.c.b16 %v1003, %v1002
        %v1009 = vsel %vm581, %v991, 0
        %1011 = vmatprep.subr.bf16.mxu0 0
        %1012 = vmatpush1.bf16.msra.mxu0 %v1004
        %1013 = vmatprep.subr.bf16.mxu0 0
        %1014 = vmatpush1.bf16.msra.mxu0 %v1005
        %1015 = vmatprep.subr.bf16.mxu0 0
        %1016 = vmatpush1.bf16.msra.mxu0 0
        %1017 = vmatprep.subr.bf16.mxu0 0
        %1018 = vmatpush1.bf16.msra.mxu0 0
        %1019 = vmatprep.subr.bf16.mxu0 0
        %1020 = vmatpush1.bf16.msra.mxu0 0
        %1021 = vmatprep.subr.bf16.mxu0 0
        %1022 = vmatpush1.bf16.msra.mxu0 0
        %1023 = vmatprep.subr.bf16.mxu0 0
        %1024 = vmatpush1.bf16.msra.mxu0 0
        %1025 = vmatprep.subr.bf16.mxu0 0
        %1026 = vmatpush1.bf16.msra.mxu0 0
        %1027 = vmatprep.subr.bf16.mxu0 0
        %1028 = vmatpush1.bf16.msra.mxu0 0
        %1029 = vmatprep.subr.bf16.mxu0 0
        %1030 = vmatpush1.bf16.msra.mxu0 0
        %1031 = vmatprep.subr.bf16.mxu0 0
        %1032 = vmatpush1.bf16.msra.mxu0 0
        %1033 = vmatprep.subr.bf16.mxu0 0
        %1034 = vmatpush1.bf16.msra.mxu0 0
        %1035 = vmatprep.subr.bf16.mxu0 0
        %1036 = vmatpush1.bf16.msra.mxu0 0
        %1037 = vmatprep.subr.bf16.mxu0 0
        %1038 = vmatpush1.bf16.msra.mxu0 0
        %1039 = vmatprep.subr.bf16.mxu0 0
        %1040 = vmatpush1.bf16.msra.mxu0 0
        %1041 = vmatprep.subr.bf16.mxu0 0
        %1042 = vmatpush1.bf16.msra.mxu0 0
        %1043 = vmatprep.mubr.bf16.mxu0 0
        %1044 = vmatmul.mubr.bf16.gmra.mrb[0].mxu0 %v1009
        %v1045 = vpop.f32.mrb[0].mxu0
        %v1046 = vadd.f32 %v995, %v1045
        %v1047 = vpop.f32.mrb[0].mxu0
        %v1048 = vpop.f32.mrb[0].mxu0
        %v1049 = vpop.f32.mrb[0].mxu0
        %1050 = vdwg.mxu0
        %v1051 = vmax.f32 %v1046, 0.0
        %vm1052 = vcmask 130048
        %v1053 = vsel %vm1052, %v1051, 0.0
        %1054 = vadd.xlane.f32.xlu0 %v1053
        %v1055 = vpop.xlane.xlu0 %1054
        %v1056 = vrcp.pop 16.0
        %v1057 = vmul.f32 %v1055, %v1056
        %v1058 = vmul.f32 %v1051, %v1051
        %v1059 = vsel %vm1052, %v1058, 0.0
        %1060 = vadd.xlane.f32.xlu0 %v1059
        %v1061 = vpop.xlane.xlu0 %1060
        %v1062 = vmul.f32 %v1061, %v1056
        %v1063 = vmul.f32 %v1057, %v1057
        %v1064 = vsub.f32 %v1062, %v1063
        %v1065 = vmax.f32 %v1064, 0.0
        %v1066 = vsub.f32 %v1051, %v1057
        %v1067 = vadd.f32 %v1065, 1e-12
        %v1068 = vrsqrt.pop %v1067
        %v1069 = vmul.f32 %v1066, %v1068
        %v1070 = vlaneseq
        %v1071 = vshrl.u32 %v1070, 7
        %v1072 = vsub.s32 4, %v1071
        %v1073 = vrot.slane %v556, %v1072
        %v1074 = vmul.f32 %v1069, %v1073
        %v1075 = vlaneseq
        %v1076 = vshrl.u32 %v1075, 7
        %v1077 = vsub.s32 5, %v1076
        %v1078 = vrot.slane %v556, %v1077
        %v1079 = vadd.f32 %v1074, %v1078
        %v1080 = vlaneseq
        %v1081 = vshrl.u32 %v1080, 7
        %v1082 = vsub.s32 0, %v1081
        %v1083 = vrot.slane %v556, %v1082
        %1085 = vrot.lane.b32.xlu0 %v1083, 32
        %v1086 = vpop.permute.xlu0 %1085
        %v1088 = vadd.f32 %v950, %v1086
        %v1089 = vmax.f32 %v1088, 0.0
        %1091 = vrot.lane.b32.xlu0 %v1089, 96
        %v1092 = vpop.permute.xlu0 %1091
        %v1094 = vsel %vm1052, %v1092, 0.0
        %1095 = vadd.xlane.f32.xlu0 %v1094
        %v1096 = vpop.xlane.xlu0 %1095
        %v1097 = vmul.f32 %v1096, %v1056
        %v1098 = vmul.f32 %v1089, %v1089
        %1100 = vrot.lane.b32.xlu0 %v1098, 96
        %v1101 = vpop.permute.xlu0 %1100
        %v1103 = vsel %vm1052, %v1101, 0.0
        %1104 = vadd.xlane.f32.xlu0 %v1103
        %v1105 = vpop.xlane.xlu0 %1104
        %v1106 = vmul.f32 %v1105, %v1056
        %v1107 = vmul.f32 %v1097, %v1097
        %v1108 = vsub.f32 %v1106, %v1107
        %v1109 = vmax.f32 %v1108, 0.0
        %v1110 = vsub.f32 %v1089, %v1097
        %v1111 = vadd.f32 %v1109, 1e-12
        %v1112 = vrsqrt.pop %v1111
        %v1113 = vmul.f32 %v1110, %v1112
        %v1114 = vlaneseq
        %v1115 = vshrl.u32 %v1114, 7
        %v1116 = vsub.s32 1, %v1115
        %v1117 = vrot.slane %v556, %v1116
        %1119 = vrot.lane.b32.xlu0 %v1117, 32
        %v1120 = vpop.permute.xlu0 %1119
        %v1122 = vmul.f32 %v1113, %v1120
        %v1123 = vlaneseq
        %v1124 = vshrl.u32 %v1123, 7
        %v1125 = vsub.s32 2, %v1124
        %v1126 = vrot.slane %v556, %v1125
        %1128 = vrot.lane.b32.xlu0 %v1126, 32
        %v1129 = vpop.permute.xlu0 %1128
        %v1131 = vadd.f32 %v1122, %v1129
        %v1132 = vld [vmem:[#allocation7] sm:$0xf]
        %v1133 = vld [vmem:[#allocation7 + $0x4] sm:$0xf]
        %v1134 = vpack.c.bf16 %v1079, %v1079
        %v1135 = vld [vmem:[#allocation9] sm:$0xf]
        %v1136 = vld [vmem:[#allocation9 + $0x4] sm:$0xf]
        %v1137 = vpack.c.bf16 %v1131, %v1131
        %1139 = vrot.lane.b32.xlu0 %v1137, 96
        %v1140 = vpop.permute.xlu0 %1139
        %v1143 = vunpack.c.l.b16 %v1135
        %v1144 = vunpack.c.l.b16 %v1136
        %v1145 = vpack.c.b16 %v1144, %v1143
        %v1148 = vsel %vm1052, %v1140, 0
        %1150 = vmatprep.subr.bf16.mxu0 0
        %1151 = vmatpush1.bf16.msra.mxu0 %v1145
        %1152 = vmatprep.subr.bf16.mxu0 0
        %1153 = vmatpush1.bf16.msra.mxu0 0
        %1154 = vmatprep.subr.bf16.mxu0 0
        %1155 = vmatpush1.bf16.msra.mxu0 0
        %1156 = vmatprep.subr.bf16.mxu0 0
        %1157 = vmatpush1.bf16.msra.mxu0 0
        %1158 = vmatprep.subr.bf16.mxu0 0
        %1159 = vmatpush1.bf16.msra.mxu0 0
        %1160 = vmatprep.subr.bf16.mxu0 0
        %1161 = vmatpush1.bf16.msra.mxu0 0
        %1162 = vmatprep.subr.bf16.mxu0 0
        %1163 = vmatpush1.bf16.msra.mxu0 0
        %1164 = vmatprep.subr.bf16.mxu0 0
        %1165 = vmatpush1.bf16.msra.mxu0 0
        %1166 = vmatprep.subr.bf16.mxu0 0
        %1167 = vmatpush1.bf16.msra.mxu0 0
        %1168 = vmatprep.subr.bf16.mxu0 0
        %1169 = vmatpush1.bf16.msra.mxu0 0
        %1170 = vmatprep.subr.bf16.mxu0 0
        %1171 = vmatpush1.bf16.msra.mxu0 0
        %1172 = vmatprep.subr.bf16.mxu0 0
        %1173 = vmatpush1.bf16.msra.mxu0 0
        %1174 = vmatprep.subr.bf16.mxu0 0
        %1175 = vmatpush1.bf16.msra.mxu0 0
        %1176 = vmatprep.subr.bf16.mxu0 0
        %1177 = vmatpush1.bf16.msra.mxu0 0
        %1178 = vmatprep.subr.bf16.mxu0 0
        %1179 = vmatpush1.bf16.msra.mxu0 0
        %1180 = vmatprep.subr.bf16.mxu0 0
        %1181 = vmatpush1.bf16.msra.mxu0 0
        %1182 = vmatprep.mubr.bf16.mxu0 0
        %1183 = vmatmul.mubr.bf16.gmra.mrb[0].mxu0 %v1148
        %v1184 = vpop.f32.mrb[0].mxu0
        %v1185 = vadd.f32 0.0, %v1184
        %v1186 = vpop.f32.mrb[0].mxu0
        %v1187 = vpop.f32.mrb[0].mxu0
        %v1188 = vpop.f32.mrb[0].mxu0
        %1189 = vdwg.mxu0
        %v1192 = vunpack.c.l.b16 %v1132
        %v1193 = vunpack.c.l.b16 %v1133
        %v1194 = vpack.c.b16 %v1193, %v1192
        %v1197 = vsel %vm1052, %v1134, 0
        %1199 = vmatprep.subr.bf16.mxu0 0
        %1200 = vmatpush1.bf16.msra.mxu0 %v1194
        %1201 = vmatprep.subr.bf16.mxu0 0
        %1202 = vmatpush1.bf16.msra.mxu0 0
        %1203 = vmatprep.subr.bf16.mxu0 0
        %1204 = vmatpush1.bf16.msra.mxu0 0
        %1205 = vmatprep.subr.bf16.mxu0 0
        %1206 = vmatpush1.bf16.msra.mxu0 0
        %1207 = vmatprep.subr.bf16.mxu0 0
        %1208 = vmatpush1.bf16.msra.mxu0 0
        %1209 = vmatprep.subr.bf16.mxu0 0
        %1210 = vmatpush1.bf16.msra.mxu0 0
        %1211 = vmatprep.subr.bf16.mxu0 0
        %1212 = vmatpush1.bf16.msra.mxu0 0
        %1213 = vmatprep.subr.bf16.mxu0 0
        %1214 = vmatpush1.bf16.msra.mxu0 0
        %1215 = vmatprep.subr.bf16.mxu0 0
        %1216 = vmatpush1.bf16.msra.mxu0 0
        %1217 = vmatprep.subr.bf16.mxu0 0
        %1218 = vmatpush1.bf16.msra.mxu0 0
        %1219 = vmatprep.subr.bf16.mxu0 0
        %1220 = vmatpush1.bf16.msra.mxu0 0
        %1221 = vmatprep.subr.bf16.mxu0 0
        %1222 = vmatpush1.bf16.msra.mxu0 0
        %1223 = vmatprep.subr.bf16.mxu0 0
        %1224 = vmatpush1.bf16.msra.mxu0 0
        %1225 = vmatprep.subr.bf16.mxu0 0
        %1226 = vmatpush1.bf16.msra.mxu0 0
        %1227 = vmatprep.subr.bf16.mxu0 0
        %1228 = vmatpush1.bf16.msra.mxu0 0
        %1229 = vmatprep.subr.bf16.mxu0 0
        %1230 = vmatpush1.bf16.msra.mxu0 0
        %1231 = vmatprep.mubr.bf16.mxu0 0
        %1232 = vmatmul.mubr.bf16.gmra.mrb[0].mxu0 %v1197
        %v1233 = vpop.f32.mrb[0].mxu0
        %v1234 = vadd.f32 %v1185, %v1233
        %v1235 = vpop.f32.mrb[0].mxu0
        %v1236 = vpop.f32.mrb[0].mxu0
        %v1237 = vpop.f32.mrb[0].mxu0
        %1238 = vdwg.mxu0
        %v1239 = vld [vmem:[%s12] sm:$0x1]
        %v1241 = vlaneseq
        %v1242 = vshrl.u32 %v1241, 7
        %v1243 = vsub.s32 0, %v1242
        %v1244 = vrot.slane %v1239, %v1243
        %v1246 = vadd.f32 %v1234, %v1244
        %v1247 = vlaneseq
        %v1248 = vand.u32 %v1247, 127
        %vm1249 = vcmp.eq.s32.totalorder %v1248, 2
        %v1250 = vxor.u32 %v1246, 2147483648
        %v1251 = vmul.f32 %v1250, 1.442695
        %v1252 = vpow.pop %v1251
        %v1253 = vadd.f32 %v1252, 1.0
        %v1254 = vrcp.pop %v1253
        %v1255 = vmul.f32 1.0, %v1254
        %v1256 = vsel %vm1249, %v1255, %v1246
        %v1257 = vpack.c.bf16 %v1256, %v1256
        %1258 = vst [vmem:[%s552] sm:$0xf] %v1257
        %p1259 = scmp.lt.s32.totalorder %s28, 1
        %s1260 = scalar_select %p1259, %s28, 1
        %s1261 = smul.addr %s1260, 4
        %s1262 = scalar_lea.vmem %s13, %s1261
        // Predicated region
        $region101: #{inference_head_v4.1} parent=71 // pred_check
          %p1263 = pneg %p329
        $region102: #{inference_head_v4.1} parent=71 // pred_check_branch
          %1265 = sbr.rel (%p1263) target = $region104
        $region103: #{inference_head_v4.1} parent=71 // pred_region
          _
        $region104: #{inference_head_v4.1} parent=71 // pred_fallthru
          _
      $region72: #{inference_head_v4.1} parent=5 // pred_fallthru
        _
      %p1266 = scmp.le.s32.totalorder 2, %s23
      // Predicated region
      $region105: #{inference_head_v4.1} parent=5 // pred_check
        %p1267 = pneg %p1266
      $region106: #{inference_head_v4.1} parent=5 // pred_check_branch
        %1269 = sbr.rel (%p1267) target = $region108
      $region107: #{inference_head_v4.1} parent=5 // pred_region
        %s1270 = ssub.s32 %s23, 2
        // Predicated region
        $region109: #{inference_head_v4.1} parent=107 // pred_check
          %p1271 = pneg %p335
        $region110: #{inference_head_v4.1} parent=107 // pred_check_branch
          %1273 = sbr.rel (%p1271) target = $region112
        $region111: #{inference_head_v4.1} parent=107 // pred_region
          %p1274 = scmp.lt.s32.totalorder %s29, 1
          %s1275 = scalar_select %p1274, %s29, 1
          %s1276 = smul.addr %s1275, 4
          %s1277 = scalar_lea.vmem %s13, %s1276
        $region112: #{inference_head_v4.1} parent=107 // pred_fallthru
          _
      $region108: #{inference_head_v4.1} parent=5 // pred_fallthru
        _
    $region6: #{inference_head_v4.1} parent=1 // loop_footer
      %s27 = sadd.s32 1, %s23
    $region7: #{inference_head_v4.1} parent=1 // loop_footer_branch
      %22 = sbr.rel target = $region3
    $region8: #{inference_head_v4.1} parent=1 // loop_exit
      _
    %1278 = vsyncpa [#allocation3], 1
    %s1279 = scalar_lea.sflag [#allocation3], 1
    %1280 = vsyncpa %s1279, 1
    %1281 = vsyncpa [#allocation5], 1
    %1282 = vsyncpa [#allocation8], 1
    %1283 = vsyncpa [#allocation11], 1

</llo_original>
